<compile_context>
chip_gen: v7x
topology: tpu7x:2x2x1
jax: 0.10.0
libtpu: 0.0.40
codegen_flags: <defaults>
</compile_context>

<pallas_src>
import jax
import jax.numpy as jnp
from jax.experimental import pallas as pl
from jax.experimental.pallas import tpu as pltpu

# Conv2d(in_channels=3, out_channels=6, kernel_size=3, stride=1, padding=0)
CIN, COUT, KH, KW = 3, 6, 3, 3
K_IM2COL = KH * KW * CIN          # 27 — contraction length of the im2col matmul
LANE = 128                        # lane-dense (zero-padded) output channel width


def _conv_kernel(x_ref, w_ref, b_ref, o_ref, col_ref):
    """One grid step: B images -> one im2col matmul on the MXU.

    x_ref:   (B, H, W, CIN)             input block (NHWC)
    w_ref:   (K_IM2COL, LANE)           weights, (kh,kw,cin)-flattened, COUT zero-padded
    b_ref:   (1, LANE)                  bias, COUT zero-padded
    o_ref:   (1, B*Hout*Wout, LANE)     lane-dense output block
    col_ref: (B, Hout, Wout, K_IM2COL)  VMEM scratch holding the patch matrix
    """
    B, H, W, _ = x_ref.shape
    Hout = H - KH + 1
    Wout = W - KW + 1
    M = B * Hout * Wout

    # Build the im2col patch matrix in VMEM: column (kh*KW + kw)*CIN + cin holds
    # the (kh, kw)-shifted window of channel cin.  These are 9 small windowed
    # copies (masked lane stores), not full per-tap relayouts.
    for kh in range(KH):
        for kw in range(KW):
            t = kh * KW + kw
            col_ref[:, :, :, t * CIN:(t + 1) * CIN] = (
                x_ref[:, kh:kh + Hout, kw:kw + Wout, :])

    patches = col_ref[...].reshape(M, K_IM2COL)           # (M, 27)

    # Single MXU push (K=27, N=128) + one fused broadcast bias add.
    acc = jnp.dot(patches, w_ref[...], preferred_element_type=jnp.float32)
    acc = acc + b_ref[...]

    # Lane-dense store: last dim is 128 -> unmasked full-width stores.
    o_ref[...] = acc.astype(o_ref.dtype)[None]


def _images_per_block(n, max_b=32):
    """Largest divisor of n that is <= max_b while keeping >=2 grid blocks
    (feeds both v7x TensorCores); falls back to a single block only if forced."""
    best = 1
    for b in range(1, min(n, max_b) + 1):
        if n % b == 0 and (n // b >= 2 or n == 1):
            best = b
    return best


def conv2d_pallas(x_nchw, weight_oihw, bias):
    """x_nchw: (N, 3, H, W), weight_oihw: (6, 3, 3, 3), bias: (6,)
    -> (N, 6, H-2, W-2), matching nn.Conv2d(3, 6, 3)."""
    N, C, H, W = x_nchw.shape
    assert C == CIN
    Hout, Wout = H - KH + 1, W - KW + 1
    HW = Hout * Wout

    B = _images_per_block(N)      # images per grid step (big blocks)
    G = N // B                    # grid size (>=2 when possible, for v7x)

    # Wrapper-side glue (tiny, fused XLA ops):
    #   input NCHW -> NHWC; weights OIHW -> (27, COUT) -> zero-pad to (27, 128).
    x_nhwc = jnp.transpose(x_nchw, (0, 2, 3, 1))
    w2 = jnp.transpose(weight_oihw, (2, 3, 1, 0)).reshape(K_IM2COL, COUT)
    w2 = jnp.pad(w2, ((0, 0), (0, LANE - COUT)))
    b2 = jnp.pad(bias, (0, LANE - COUT)).reshape(1, LANE)

    out = pl.pallas_call(
        _conv_kernel,
        out_shape=jax.ShapeDtypeStruct((G, B * HW, LANE), x_nchw.dtype),
        grid_spec=pltpu.PrefetchScalarGridSpec(
            num_scalar_prefetch=0,
            grid=(G,),
            in_specs=[
                pl.BlockSpec((B, H, W, CIN), lambda g: (g, 0, 0, 0)),
                pl.BlockSpec((K_IM2COL, LANE), lambda g: (0, 0)),
                pl.BlockSpec((1, LANE), lambda g: (0, 0)),
            ],
            out_specs=pl.BlockSpec((1, B * HW, LANE), lambda g: (g, 0, 0)),
            scratch_shapes=[
                pltpu.VMEM((B, Hout, Wout, K_IM2COL), x_nchw.dtype)],
        ),
        compiler_params=pltpu.CompilerParams(
            dimension_semantics=("parallel",)),
    )(x_nhwc, w2, b2)

    # (G, B*HW, 128) -> (N, Hout, Wout, COUT) -> NCHW (cheap slice + transpose).
    out = out.reshape(N, Hout, Wout, LANE)[..., :COUT]
    return jnp.transpose(out, (0, 3, 1, 2))


if __name__ == "__main__":
    key = jax.random.PRNGKey(0)
    kx, kw_, kb = jax.random.split(key, 3)

    # Deterministic parameter init (shapes match nn.Conv2d(3, 6, 3)).
    fan_in = CIN * KH * KW
    bound = 1.0 / (fan_in ** 0.5)
    weight = jax.random.uniform(kw_, (COUT, CIN, KH, KW), jnp.float32, -bound, bound)
    bias = jax.random.uniform(kb, (COUT,), jnp.float32, -bound, bound)

    # Small input consistent with the module: N=2, C=3, H=W=16 (NCHW).
    x = jax.random.normal(kx, (2, CIN, 16, 16), jnp.float32)

    out = conv2d_pallas(x, weight, bias)
    out = jax.block_until_ready(out)

    # Sanity check against XLA's conv (silent).
    ref = jax.lax.conv_general_dilated(
        x, weight, window_strides=(1, 1), padding="VALID",
        dimension_numbers=("NCHW", "OIHW", "NCHW")) + bias[None, :, None, None]
    assert out.shape == (2, COUT, 14, 14)
    assert jnp.allclose(out, ref, atol=1e-5, rtol=1e-5)

    print("KERNEL_OK")
</pallas_src>

<mosaic_0001>
module attributes {stable_mosaic.version = 11 : i64} {
  func.func @_conv_kernel(%arg0: i32, %arg1: memref<1x16x16x3xf32, #tpu.memory_space<vmem>>, %arg2: memref<27x128xf32, #tpu.memory_space<vmem>>, %arg3: memref<1x128xf32, #tpu.memory_space<vmem>>, %arg4: memref<1x196x128xf32, #tpu.memory_space<vmem>>, %arg5: memref<1x14x14x27xf32, #tpu.memory_space<vmem>>) attributes {dimension_semantics = [#tpu.dimension_semantics<parallel>], iteration_bounds = array<i64: 2>, scalar_prefetch = 0 : i64, scratch_operands = 1 : i64, tpu.core_type = #tpu.core_type<tc>, window_params = [{transform_indices = @transform_0, window_bounds = array<i64: 1, 16, 16, 3>}, {pipeline_mode = #tpu.pipeline_mode<synchronous>, transform_indices = @transform_1, window_bounds = array<i64: 27, 128>}, {pipeline_mode = #tpu.pipeline_mode<synchronous>, transform_indices = @transform_2, window_bounds = array<i64: 1, 128>}, {transform_indices = @transform_3, window_bounds = array<i64: 1, 196, 128>}]} {
    %c0 = arith.constant 0 : index
    %c0_0 = arith.constant 0 : index
    %c0_1 = arith.constant 0 : index
    %c0_2 = arith.constant 0 : index
    %0 = vector.load %arg1[%c0, %c0_0, %c0_1, %c0_2] : memref<1x16x16x3xf32, #tpu.memory_space<vmem>>, vector<1x14x14x3xf32>
    %c0_3 = arith.constant 0 : index
    %c0_4 = arith.constant 0 : index
    %c0_5 = arith.constant 0 : index
    %c0_6 = arith.constant 0 : index
    %1 = vector.load %arg5[%c0_3, %c0_4, %c0_5, %c0_6] : memref<1x14x14x27xf32, #tpu.memory_space<vmem>>, vector<1x14x14x3xf32>
    tpu.vector_store %arg5[%c0_3, %c0_4, %c0_5, %c0_6], %0 {strides = array<i32>} : memref<1x14x14x27xf32, #tpu.memory_space<vmem>>, vector<1x14x14x3xf32>,
    %c0_7 = arith.constant 0 : index
    %c0_8 = arith.constant 0 : index
    %c1 = arith.constant 1 : index
    %c0_9 = arith.constant 0 : index
    %2 = vector.load %arg1[%c0_7, %c0_8, %c1, %c0_9] : memref<1x16x16x3xf32, #tpu.memory_space<vmem>>, vector<1x14x14x3xf32>
    %c0_10 = arith.constant 0 : index
    %c0_11 = arith.constant 0 : index
    %c0_12 = arith.constant 0 : index
    %c3 = arith.constant 3 : index
    %3 = vector.load %arg5[%c0_10, %c0_11, %c0_12, %c3] : memref<1x14x14x27xf32, #tpu.memory_space<vmem>>, vector<1x14x14x3xf32>
    tpu.vector_store %arg5[%c0_10, %c0_11, %c0_12, %c3], %2 {strides = array<i32>} : memref<1x14x14x27xf32, #tpu.memory_space<vmem>>, vector<1x14x14x3xf32>,
    %c0_13 = arith.constant 0 : index
    %c0_14 = arith.constant 0 : index
    %c2 = arith.constant 2 : index
    %c0_15 = arith.constant 0 : index
    %4 = vector.load %arg1[%c0_13, %c0_14, %c2, %c0_15] : memref<1x16x16x3xf32, #tpu.memory_space<vmem>>, vector<1x14x14x3xf32>
    %c0_16 = arith.constant 0 : index
    %c0_17 = arith.constant 0 : index
    %c0_18 = arith.constant 0 : index
    %c6 = arith.constant 6 : index
    %5 = vector.load %arg5[%c0_16, %c0_17, %c0_18, %c6] : memref<1x14x14x27xf32, #tpu.memory_space<vmem>>, vector<1x14x14x3xf32>
    tpu.vector_store %arg5[%c0_16, %c0_17, %c0_18, %c6], %4 {strides = array<i32>} : memref<1x14x14x27xf32, #tpu.memory_space<vmem>>, vector<1x14x14x3xf32>,
    %c0_19 = arith.constant 0 : index
    %c1_20 = arith.constant 1 : index
    %c0_21 = arith.constant 0 : index
    %c0_22 = arith.constant 0 : index
    %6 = vector.load %arg1[%c0_19, %c1_20, %c0_21, %c0_22] : memref<1x16x16x3xf32, #tpu.memory_space<vmem>>, vector<1x14x14x3xf32>
    %c0_23 = arith.constant 0 : index
    %c0_24 = arith.constant 0 : index
    %c0_25 = arith.constant 0 : index
    %c9 = arith.constant 9 : index
    %7 = vector.load %arg5[%c0_23, %c0_24, %c0_25, %c9] : memref<1x14x14x27xf32, #tpu.memory_space<vmem>>, vector<1x14x14x3xf32>
    tpu.vector_store %arg5[%c0_23, %c0_24, %c0_25, %c9], %6 {strides = array<i32>} : memref<1x14x14x27xf32, #tpu.memory_space<vmem>>, vector<1x14x14x3xf32>,
    %c0_26 = arith.constant 0 : index
    %c1_27 = arith.constant 1 : index
    %c1_28 = arith.constant 1 : index
    %c0_29 = arith.constant 0 : index
    %8 = vector.load %arg1[%c0_26, %c1_27, %c1_28, %c0_29] : memref<1x16x16x3xf32, #tpu.memory_space<vmem>>, vector<1x14x14x3xf32>
    %c0_30 = arith.constant 0 : index
    %c0_31 = arith.constant 0 : index
    %c0_32 = arith.constant 0 : index
    %c12 = arith.constant 12 : index
    %9 = vector.load %arg5[%c0_30, %c0_31, %c0_32, %c12] : memref<1x14x14x27xf32, #tpu.memory_space<vmem>>, vector<1x14x14x3xf32>
    tpu.vector_store %arg5[%c0_30, %c0_31, %c0_32, %c12], %8 {strides = array<i32>} : memref<1x14x14x27xf32, #tpu.memory_space<vmem>>, vector<1x14x14x3xf32>,
    %c0_33 = arith.constant 0 : index
    %c1_34 = arith.constant 1 : index
    %c2_35 = arith.constant 2 : index
    %c0_36 = arith.constant 0 : index
    %10 = vector.load %arg1[%c0_33, %c1_34, %c2_35, %c0_36] : memref<1x16x16x3xf32, #tpu.memory_space<vmem>>, vector<1x14x14x3xf32>
    %c0_37 = arith.constant 0 : index
    %c0_38 = arith.constant 0 : index
    %c0_39 = arith.constant 0 : index
    %c15 = arith.constant 15 : index
    %11 = vector.load %arg5[%c0_37, %c0_38, %c0_39, %c15] : memref<1x14x14x27xf32, #tpu.memory_space<vmem>>, vector<1x14x14x3xf32>
    tpu.vector_store %arg5[%c0_37, %c0_38, %c0_39, %c15], %10 {strides = array<i32>} : memref<1x14x14x27xf32, #tpu.memory_space<vmem>>, vector<1x14x14x3xf32>,
    %c0_40 = arith.constant 0 : index
    %c2_41 = arith.constant 2 : index
    %c0_42 = arith.constant 0 : index
    %c0_43 = arith.constant 0 : index
    %12 = vector.load %arg1[%c0_40, %c2_41, %c0_42, %c0_43] : memref<1x16x16x3xf32, #tpu.memory_space<vmem>>, vector<1x14x14x3xf32>
    %c0_44 = arith.constant 0 : index
    %c0_45 = arith.constant 0 : index
    %c0_46 = arith.constant 0 : index
    %c18 = arith.constant 18 : index
    %13 = vector.load %arg5[%c0_44, %c0_45, %c0_46, %c18] : memref<1x14x14x27xf32, #tpu.memory_space<vmem>>, vector<1x14x14x3xf32>
    tpu.vector_store %arg5[%c0_44, %c0_45, %c0_46, %c18], %12 {strides = array<i32>} : memref<1x14x14x27xf32, #tpu.memory_space<vmem>>, vector<1x14x14x3xf32>,
    %c0_47 = arith.constant 0 : index
    %c2_48 = arith.constant 2 : index
    %c1_49 = arith.constant 1 : index
    %c0_50 = arith.constant 0 : index
    %14 = vector.load %arg1[%c0_47, %c2_48, %c1_49, %c0_50] : memref<1x16x16x3xf32, #tpu.memory_space<vmem>>, vector<1x14x14x3xf32>
    %c0_51 = arith.constant 0 : index
    %c0_52 = arith.constant 0 : index
    %c0_53 = arith.constant 0 : index
    %c21 = arith.constant 21 : index
    %15 = vector.load %arg5[%c0_51, %c0_52, %c0_53, %c21] : memref<1x14x14x27xf32, #tpu.memory_space<vmem>>, vector<1x14x14x3xf32>
    tpu.vector_store %arg5[%c0_51, %c0_52, %c0_53, %c21], %14 {strides = array<i32>} : memref<1x14x14x27xf32, #tpu.memory_space<vmem>>, vector<1x14x14x3xf32>,
    %c0_54 = arith.constant 0 : index
    %c2_55 = arith.constant 2 : index
    %c2_56 = arith.constant 2 : index
    %c0_57 = arith.constant 0 : index
    %16 = vector.load %arg1[%c0_54, %c2_55, %c2_56, %c0_57] : memref<1x16x16x3xf32, #tpu.memory_space<vmem>>, vector<1x14x14x3xf32>
    %c0_58 = arith.constant 0 : index
    %c0_59 = arith.constant 0 : index
    %c0_60 = arith.constant 0 : index
    %c24 = arith.constant 24 : index
    %17 = vector.load %arg5[%c0_58, %c0_59, %c0_60, %c24] : memref<1x14x14x27xf32, #tpu.memory_space<vmem>>, vector<1x14x14x3xf32>
    tpu.vector_store %arg5[%c0_58, %c0_59, %c0_60, %c24], %16 {strides = array<i32>} : memref<1x14x14x27xf32, #tpu.memory_space<vmem>>, vector<1x14x14x3xf32>,
    %c0_61 = arith.constant 0 : index
    %c0_62 = arith.constant 0 : index
    %c0_63 = arith.constant 0 : index
    %c0_64 = arith.constant 0 : index
    %18 = vector.load %arg5[%c0_61, %c0_62, %c0_63, %c0_64] : memref<1x14x14x27xf32, #tpu.memory_space<vmem>>, vector<1x14x14x27xf32>
    %19 = vector.shape_cast %18 : vector<1x14x14x27xf32> to vector<196x27xf32>
    %c0_65 = arith.constant 0 : index
    %c0_66 = arith.constant 0 : index
    %20 = vector.load %arg2[%c0_65, %c0_66] : memref<27x128xf32, #tpu.memory_space<vmem>>, vector<27x128xf32>
    %cst = arith.constant dense<0.000000e+00> : vector<196x128xf32>
    %21 = tpu.matmul %19, %20, %cst {dimension_numbers = #tpu.dot_dimension_numbers<[1], [0], [0], [1], [0, 0, 1, 1], [], []>} : vector<196x27xf32>, vector<27x128xf32>, vector<196x128xf32> -> vector<196x128xf32>
    %c0_67 = arith.constant 0 : index
    %c0_68 = arith.constant 0 : index
    %22 = vector.load %arg3[%c0_67, %c0_68] : memref<1x128xf32, #tpu.memory_space<vmem>>, vector<1x128xf32>
    %23 = vector.broadcast %22 : vector<1x128xf32> to vector<196x128xf32>
    %24 = arith.addf %21, %23 : vector<196x128xf32>
    %25 = vector.shape_cast %24 : vector<196x128xf32> to vector<1x196x128xf32>
    %c0_69 = arith.constant 0 : index
    %c0_70 = arith.constant 0 : index
    %c0_71 = arith.constant 0 : index
    %26 = vector.load %arg4[%c0_69, %c0_70, %c0_71] : memref<1x196x128xf32, #tpu.memory_space<vmem>>, vector<1x196x128xf32>
    tpu.vector_store %arg4[%c0_69, %c0_70, %c0_71], %25 {strides = array<i32>} : memref<1x196x128xf32, #tpu.memory_space<vmem>>, vector<1x196x128xf32>,
    return
  }
  func.func @transform_0(%arg0: i32) -> (i32, i32, i32, i32) {
    %c0_i32 = arith.constant 0 : i32
    %c0_i32_0 = arith.constant 0 : i32
    %c0_i32_1 = arith.constant 0 : i32
    %c0_i32_2 = arith.constant 0 : i32
    return %arg0, %c0_i32, %c0_i32_0, %c0_i32_1 : i32, i32, i32, i32
  }
  func.func @transform_1(%arg0: i32) -> (i32, i32) {
    %c0_i32 = arith.constant 0 : i32
    %c0_i32_0 = arith.constant 0 : i32
    %c0_i32_1 = arith.constant 0 : i32
    return %c0_i32, %c0_i32_0 : i32, i32
  }
  func.func @transform_2(%arg0: i32) -> (i32, i32) {
    %c0_i32 = arith.constant 0 : i32
    %c0_i32_0 = arith.constant 0 : i32
    %c0_i32_1 = arith.constant 0 : i32
    return %c0_i32, %c0_i32_0 : i32, i32
  }
  func.func @transform_3(%arg0: i32) -> (i32, i32, i32) {
    %c0_i32 = arith.constant 0 : i32
    %c0_i32_0 = arith.constant 0 : i32
    %c0_i32_1 = arith.constant 0 : i32
    return %arg0, %c0_i32, %c0_i32_0 : i32, i32, i32
  }
}

</mosaic_0001>

<llo_original>
// kernel: tpu_custom_call.1
$region0: #{tpu_custom_call.1}
  #allocation0 [shape = 'u32[]', space=smem, size = 0x4, offset = 0x4, fixed_abs, tag = 'smem constant byte address 0x4 - core index']
  #allocation1 [shape = 'u32[144,128]{1,0:T(1,128)}', space=vmem, size = 0x12000, scoped, tag = 'internal scratch']
  #allocation2 [shape = 'f32[1,14,14,27]{3,2,1,0:T(8,128)}', space=vmem, size = 0x1c000, scoped, tag = 'scratch operand']
  %s0 = inlined_call_operand.vmem [shape: f32[2,16,16,3], index: 0, kind: input, shape index: {}]
  %s1 = inlined_call_operand.vmem [shape: f32[27,128], index: 1, kind: input, shape index: {}]
  %s2 = inlined_call_operand.vmem [shape: f32[1,128], index: 2, kind: input, shape index: {}]
  %s3 = inlined_call_operand.vmem [shape: f32[2,196,128], index: 3, kind: output, shape index: {}]
  %s4 = sld [smem:[#allocation0]]
  $region45: #{tpu_custom_call.1} parent=0
    _
  %s6 = ssub.s32 1, %s4
  %s7 = scalar_select 0, %s6, %s4
  loop: start=0, step=1, limit=4
  $region2: #{tpu_custom_call.1} parent=0 // loop_pre_header
    _
  $region3: #{tpu_custom_call.1} parent=0 // loop_header
    %s9 = sphi 0, %s13
    %p10 = scmp.ge.s32.totalorder %s9, 4
    %s19 = sphi 0, %s21
    %s22 = sphi 0, %s19
    %s23 = sphi 0, %s22
    %s39 = sphi 0, %s23
    %s43 = sphi 0, %s43
    %s45 = sphi 0, %s43
    %s46 = sphi 0, %s45
    %s60 = sphi 0, %s46
    %s64 = sphi 0, %s64
    %s66 = sphi 0, %s64
    %s67 = sphi 0, %s66
    %s81 = sphi 0, %s67
    %s87 = sphi 0, %s89
    %s90 = sphi 0, %s87
    %s91 = sphi 0, %s90
    %s107 = sphi 0, %s91
  $region4: #{tpu_custom_call.1} parent=0 // loop_header_branch
    %12 = sbr.rel (%p10) target = $region8
  $region5: #{tpu_custom_call.1} parent=0 // loop_body
    %s14 = ssub.s32 %s9, 1
    %s15 = ssub.s32 %s9, 2
    %s16 = sadd.s32 %s9, 1
    %s17 = ssub.s32 %s9, %s16
    %p18 = scmp.eq.s32.totalorder %s17, 0
    %s20 = sadd.s32 %s19, 1
    %s21 = scalar_select %p18, %s19, %s20
    %p24 = pneg %p18
    %p25 = scmp.eq.s32.totalorder %s9, 1
    %p26 = por %p24, %p25
    %p27 = scmp.ne.s32.totalorder %s19, %s22
    %p28 = scmp.eq.s32.totalorder %s9, 0
    %p29 = por %p27, %p28
    %p30 = scmp.ne.s32.totalorder %s19, %s22
    %p31 = scmp.eq.s32.totalorder %s14, 1
    %p32 = por %p30, %p31
    %p33 = scmp.ne.s32.totalorder %s22, %s23
    %p34 = scmp.eq.s32.totalorder %s14, 0
    %p35 = por %p33, %p34
    %p36 = scmp.ne.s32.totalorder %s22, %s23
    %p37 = scmp.eq.s32.totalorder %s15, 1
    %p38 = por %p36, %p37
    %p40 = scmp.ne.s32.totalorder %s23, %s39
    %p41 = scmp.eq.s32.totalorder %s15, 0
    %p42 = por %p40, %p41
    %s44 = sadd.s32 %s43, 1
    %p47 = scmp.eq.s32.totalorder %s9, 1
    %p48 = scmp.ne.s32.totalorder %s43, %s45
    %p49 = scmp.eq.s32.totalorder %s9, 0
    %p50 = por %p48, %p49
    %p51 = scmp.ne.s32.totalorder %s43, %s45
    %p52 = scmp.eq.s32.totalorder %s14, 1
    %p53 = por %p51, %p52
    %p54 = scmp.ne.s32.totalorder %s45, %s46
    %p55 = scmp.eq.s32.totalorder %s14, 0
    %p56 = por %p54, %p55
    %p57 = scmp.ne.s32.totalorder %s45, %s46
    %p58 = scmp.eq.s32.totalorder %s15, 1
    %p59 = por %p57, %p58
    %p61 = scmp.ne.s32.totalorder %s46, %s60
    %p62 = scmp.eq.s32.totalorder %s15, 0
    %p63 = por %p61, %p62
    %s65 = sadd.s32 %s64, 1
    %p68 = scmp.eq.s32.totalorder %s9, 1
    %p69 = scmp.ne.s32.totalorder %s64, %s66
    %p70 = scmp.eq.s32.totalorder %s9, 0
    %p71 = por %p69, %p70
    %p72 = scmp.ne.s32.totalorder %s64, %s66
    %p73 = scmp.eq.s32.totalorder %s14, 1
    %p74 = por %p72, %p73
    %p75 = scmp.ne.s32.totalorder %s66, %s67
    %p76 = scmp.eq.s32.totalorder %s14, 0
    %p77 = por %p75, %p76
    %p78 = scmp.ne.s32.totalorder %s66, %s67
    %p79 = scmp.eq.s32.totalorder %s15, 1
    %p80 = por %p78, %p79
    %p82 = scmp.ne.s32.totalorder %s67, %s81
    %p83 = scmp.eq.s32.totalorder %s15, 0
    %p84 = por %p82, %p83
    %s85 = ssub.s32 %s9, %s16
    %p86 = scmp.eq.s32.totalorder %s85, 0
    %s88 = sadd.s32 %s87, 1
    %s89 = scalar_select %p86, %s87, %s88
    %p92 = pneg %p86
    %p93 = scmp.eq.s32.totalorder %s9, 1
    %p94 = por %p92, %p93
    %p95 = scmp.ne.s32.totalorder %s87, %s90
    %p96 = scmp.eq.s32.totalorder %s9, 0
    %p97 = por %p95, %p96
    %p98 = scmp.ne.s32.totalorder %s87, %s90
    %p99 = scmp.eq.s32.totalorder %s14, 1
    %p100 = por %p98, %p99
    %p101 = scmp.ne.s32.totalorder %s90, %s91
    %p102 = scmp.eq.s32.totalorder %s14, 0
    %p103 = por %p101, %p102
    %p104 = scmp.ne.s32.totalorder %s90, %s91
    %p105 = scmp.eq.s32.totalorder %s15, 1
    %p106 = por %p104, %p105
    %p108 = scmp.ne.s32.totalorder %s91, %s107
    %p109 = scmp.eq.s32.totalorder %s15, 0
    %p110 = por %p108, %p109
    %p111 = scmp.le.s32.totalorder 1, %s9
    %p112 = scmp.lt.s32.totalorder %s9, 3
    %p113 = pnand %p111, %p112
    %p114 = pneg %p113
    // Predicated region
    $region9: #{tpu_custom_call.1} parent=5 // pred_check
      _
    $region10: #{tpu_custom_call.1} parent=5 // pred_check_branch
      %116 = sbr.rel (%p113) target = $region12
    $region11: #{tpu_custom_call.1} parent=5 // pred_region
      %s117 = ssub.s32 %s9, 1
      // Predicated region
      $region13: #{tpu_custom_call.1} parent=11 // pred_check
        %p118 = pneg %p56
      $region14: #{tpu_custom_call.1} parent=11 // pred_check_branch
        %120 = sbr.rel (%p118) target = $region16
      $region15: #{tpu_custom_call.1} parent=11 // pred_region
        _
      $region16: #{tpu_custom_call.1} parent=11 // pred_fallthru
        _
      // Predicated region
      $region17: #{tpu_custom_call.1} parent=11 // pred_check
        %p121 = pneg %p77
      $region18: #{tpu_custom_call.1} parent=11 // pred_check_branch
        %123 = sbr.rel (%p121) target = $region20
      $region19: #{tpu_custom_call.1} parent=11 // pred_region
        _
      $region20: #{tpu_custom_call.1} parent=11 // pred_fallthru
        _
    $region12: #{tpu_custom_call.1} parent=5 // pred_fallthru
      _
    %p124 = scmp.lt.s32.totalorder %s9, 2
    // Predicated region
    $region21: #{tpu_custom_call.1} parent=5 // pred_check
      %p125 = pneg %p124
    $region22: #{tpu_custom_call.1} parent=5 // pred_check_branch
      %127 = sbr.rel (%p125) target = $region24
    $region23: #{tpu_custom_call.1} parent=5 // pred_region
      // Predicated region
      $region25: #{tpu_custom_call.1} parent=23 // pred_check
        %p128 = pneg %p29
      $region26: #{tpu_custom_call.1} parent=23 // pred_check_branch
        %130 = sbr.rel (%p128) target = $region28
      $region27: #{tpu_custom_call.1} parent=23 // pred_region
        %p131 = scmp.lt.s32.totalorder %s9, 1
        %s132 = scalar_select %p131, %s9, 1
        %s133 = smul.addr %s132, 32
        %s134 = smul.addr %s133, 8
        %s135 = scalar_lea.vmem %s0, %s134
      $region28: #{tpu_custom_call.1} parent=23 // pred_fallthru
        _
    $region24: #{tpu_custom_call.1} parent=5 // pred_fallthru
      _
    %p136 = scmp.le.s32.totalorder 1, %s9
    %p137 = scmp.lt.s32.totalorder %s9, 3
    %p138 = pnand %p136, %p137
    %p139 = pneg %p138
    // Predicated region
    $region29: #{tpu_custom_call.1} parent=5 // pred_check
      _
    $region30: #{tpu_custom_call.1} parent=5 // pred_check_branch
      %141 = sbr.rel (%p138) target = $region32
    $region31: #{tpu_custom_call.1} parent=5 // pred_region
      %s142 = ssub.s32 %s9, 1
      %p143 = scmp.lt.s32.totalorder %s14, 1
      %s144 = scalar_select %p143, %s14, 1
      %s145 = smul.addr %s144, 32
      %s146 = smul.addr %s145, 8
      %s147 = scalar_lea.vmem %s0, %s146
      %p148 = pneg %p35
      %p149 = pneg %p32
      %p150 = pneg %p56
      %p151 = pneg %p53
      %p152 = pneg %p77
      %p153 = pneg %p74
      %p154 = pneg %p103
      %p155 = pneg %p100
      %p156 = scmp.lt.s32.totalorder %s14, 1
      %s157 = scalar_select %p156, %s14, 1
      %s158 = smul.addr %s157, 25
      %s159 = smul.addr %s158, 8
      %s160 = scalar_lea.vmem %s3, %s159
      %p161 = scmp.lt.s32.totalorder %s14, 1
      %s162 = scalar_select %p161, %s14, 1
      %s163 = smul.addr %s162, 32
      %s164 = smul.addr %s163, 8
      %s165 = scalar_lea.vmem %s0, %s164
      %p166 = scmp.lt.s32.totalorder %s14, 1
      %s167 = scalar_select %p166, %s14, 1
      %s168 = smul.addr %s167, 25
      %s169 = smul.addr %s168, 8
      %s170 = scalar_lea.vmem %s3, %s169
      %v171 = vld [vmem:[%s165] sm:$0xff]
      %v172 = vld [vmem:[%s165 + $0x8] sm:$0x3f]
      %v173 = vld [vmem:[%s165 + $0x10] sm:$0xff]
      %v174 = vld [vmem:[%s165 + $0x18] sm:$0x3f]
      %v175 = vld [vmem:[%s165 + $0x20] sm:$0xff]
      %v176 = vld [vmem:[%s165 + $0x28] sm:$0x3f]
      %v177 = vld [vmem:[%s165 + $0x30] sm:$0xff]
      %v178 = vld [vmem:[%s165 + $0x38] sm:$0x3f]
      %v179 = vld [vmem:[%s165 + $0x40] sm:$0xff]
      %v180 = vld [vmem:[%s165 + $0x48] sm:$0x3f]
      %v181 = vld [vmem:[%s165 + $0x50] sm:$0xff]
      %v182 = vld [vmem:[%s165 + $0x58] sm:$0x3f]
      %v183 = vld [vmem:[%s165 + $0x60] sm:$0xff]
      %v184 = vld [vmem:[%s165 + $0x68] sm:$0x3f]
      %v185 = vld [vmem:[%s165 + $0x70] sm:$0xff]
      %v186 = vld [vmem:[%s165 + $0x78] sm:$0x3f]
      %v187 = vld [vmem:[%s165 + $0x80] sm:$0xff]
      %v188 = vld [vmem:[%s165 + $0x88] sm:$0x3f]
      %v189 = vld [vmem:[%s165 + $0x90] sm:$0xff]
      %v190 = vld [vmem:[%s165 + $0x98] sm:$0x3f]
      %v191 = vld [vmem:[%s165 + $0xa0] sm:$0xff]
      %v192 = vld [vmem:[%s165 + $0xa8] sm:$0x3f]
      %v193 = vld [vmem:[%s165 + $0xb0] sm:$0xff]
      %v194 = vld [vmem:[%s165 + $0xb8] sm:$0x3f]
      %v195 = vld [vmem:[%s165 + $0xc0] sm:$0xff]
      %v196 = vld [vmem:[%s165 + $0xc8] sm:$0x3f]
      %v197 = vld [vmem:[%s165 + $0xd0] sm:$0xff]
      %v198 = vld [vmem:[%s165 + $0xd8] sm:$0x3f]
      %vm199 = vcmask 23552
      %200 = vst.msk [vmem:[#allocation2] sm:$0xff] %vm199, %v171
      %vm201 = vcmask 21504
      %202 = vst.msk [vmem:[#allocation2 + $0x8] sm:$0x3f] %vm201, %v172
      %203 = vst.msk [vmem:[#allocation2 + $0x10] sm:$0xff] %vm199, %v173
      %204 = vst.msk [vmem:[#allocation2 + $0x18] sm:$0x3f] %vm201, %v174
      %205 = vst.msk [vmem:[#allocation2 + $0x20] sm:$0xff] %vm199, %v175
      %206 = vst.msk [vmem:[#allocation2 + $0x28] sm:$0x3f] %vm201, %v176
      %207 = vst.msk [vmem:[#allocation2 + $0x30] sm:$0xff] %vm199, %v177
      %208 = vst.msk [vmem:[#allocation2 + $0x38] sm:$0x3f] %vm201, %v178
      %209 = vst.msk [vmem:[#allocation2 + $0x40] sm:$0xff] %vm199, %v179
      %210 = vst.msk [vmem:[#allocation2 + $0x48] sm:$0x3f] %vm201, %v180
      %211 = vst.msk [vmem:[#allocation2 + $0x50] sm:$0xff] %vm199, %v181
      %212 = vst.msk [vmem:[#allocation2 + $0x58] sm:$0x3f] %vm201, %v182
      %213 = vst.msk [vmem:[#allocation2 + $0x60] sm:$0xff] %vm199, %v183
      %214 = vst.msk [vmem:[#allocation2 + $0x68] sm:$0x3f] %vm201, %v184
      %215 = vst.msk [vmem:[#allocation2 + $0x70] sm:$0xff] %vm199, %v185
      %216 = vst.msk [vmem:[#allocation2 + $0x78] sm:$0x3f] %vm201, %v186
      %217 = vst.msk [vmem:[#allocation2 + $0x80] sm:$0xff] %vm199, %v187
      %218 = vst.msk [vmem:[#allocation2 + $0x88] sm:$0x3f] %vm201, %v188
      %219 = vst.msk [vmem:[#allocation2 + $0x90] sm:$0xff] %vm199, %v189
      %220 = vst.msk [vmem:[#allocation2 + $0x98] sm:$0x3f] %vm201, %v190
      %221 = vst.msk [vmem:[#allocation2 + $0xa0] sm:$0xff] %vm199, %v191
      %222 = vst.msk [vmem:[#allocation2 + $0xa8] sm:$0x3f] %vm201, %v192
      %223 = vst.msk [vmem:[#allocation2 + $0xb0] sm:$0xff] %vm199, %v193
      %224 = vst.msk [vmem:[#allocation2 + $0xb8] sm:$0x3f] %vm201, %v194
      %225 = vst.msk [vmem:[#allocation2 + $0xc0] sm:$0xff] %vm199, %v195
      %226 = vst.msk [vmem:[#allocation2 + $0xc8] sm:$0x3f] %vm201, %v196
      %227 = vst.msk [vmem:[#allocation2 + $0xd0] sm:$0xff] %vm199, %v197
      %228 = vst.msk [vmem:[#allocation2 + $0xd8] sm:$0x3f] %vm201, %v198
      %v229 = vld [vmem:[%s165 + $0x1] sm:$0xff]
      %v230 = vld [vmem:[%s165 + $0x9] sm:$0x3f]
      %v231 = vld [vmem:[%s165 + $0x11] sm:$0xff]
      %v232 = vld [vmem:[%s165 + $0x19] sm:$0x3f]
      %v233 = vld [vmem:[%s165 + $0x21] sm:$0xff]
      %v234 = vld [vmem:[%s165 + $0x29] sm:$0x3f]
      %v235 = vld [vmem:[%s165 + $0x31] sm:$0xff]
      %v236 = vld [vmem:[%s165 + $0x39] sm:$0x3f]
      %v237 = vld [vmem:[%s165 + $0x41] sm:$0xff]
      %v238 = vld [vmem:[%s165 + $0x49] sm:$0x3f]
      %v239 = vld [vmem:[%s165 + $0x51] sm:$0xff]
      %v240 = vld [vmem:[%s165 + $0x59] sm:$0x3f]
      %v241 = vld [vmem:[%s165 + $0x61] sm:$0xff]
      %v242 = vld [vmem:[%s165 + $0x69] sm:$0x3f]
      %v243 = vld [vmem:[%s165 + $0x71] sm:$0xff]
      %v244 = vld [vmem:[%s165 + $0x79] sm:$0x3f]
      %v245 = vld [vmem:[%s165 + $0x81] sm:$0xff]
      %v246 = vld [vmem:[%s165 + $0x89] sm:$0x3f]
      %v247 = vld [vmem:[%s165 + $0x91] sm:$0xff]
      %v248 = vld [vmem:[%s165 + $0x99] sm:$0x3f]
      %v249 = vld [vmem:[%s165 + $0xa1] sm:$0xff]
      %v250 = vld [vmem:[%s165 + $0xa9] sm:$0x3f]
      %v251 = vld [vmem:[%s165 + $0xb1] sm:$0xff]
      %v252 = vld [vmem:[%s165 + $0xb9] sm:$0x3f]
      %v253 = vld [vmem:[%s165 + $0xc1] sm:$0xff]
      %v254 = vld [vmem:[%s165 + $0xc9] sm:$0x3f]
      %v255 = vld [vmem:[%s165 + $0xd1] sm:$0xff]
      %v256 = vld [vmem:[%s165 + $0xd9] sm:$0x3f]
      %285 = vrot.lane.b32.xlu0 %v229, 3
      %v286 = vpop.permute.xlu0 %285
      %287 = vrot.lane.b32.xlu0 %v230, 3
      %v288 = vpop.permute.xlu0 %287
      %289 = vrot.lane.b32.xlu0 %v231, 3
      %v290 = vpop.permute.xlu0 %289
      %291 = vrot.lane.b32.xlu0 %v232, 3
      %v292 = vpop.permute.xlu0 %291
      %293 = vrot.lane.b32.xlu0 %v233, 3
      %v294 = vpop.permute.xlu0 %293
      %295 = vrot.lane.b32.xlu0 %v234, 3
      %v296 = vpop.permute.xlu0 %295
      %297 = vrot.lane.b32.xlu0 %v235, 3
      %v298 = vpop.permute.xlu0 %297
      %299 = vrot.lane.b32.xlu0 %v236, 3
      %v300 = vpop.permute.xlu0 %299
      %301 = vrot.lane.b32.xlu0 %v237, 3
      %v302 = vpop.permute.xlu0 %301
      %303 = vrot.lane.b32.xlu0 %v238, 3
      %v304 = vpop.permute.xlu0 %303
      %305 = vrot.lane.b32.xlu0 %v239, 3
      %v306 = vpop.permute.xlu0 %305
      %307 = vrot.lane.b32.xlu0 %v240, 3
      %v308 = vpop.permute.xlu0 %307
      %309 = vrot.lane.b32.xlu0 %v241, 3
      %v310 = vpop.permute.xlu0 %309
      %311 = vrot.lane.b32.xlu0 %v242, 3
      %v312 = vpop.permute.xlu0 %311
      %313 = vrot.lane.b32.xlu0 %v243, 3
      %v314 = vpop.permute.xlu0 %313
      %315 = vrot.lane.b32.xlu0 %v244, 3
      %v316 = vpop.permute.xlu0 %315
      %317 = vrot.lane.b32.xlu0 %v245, 3
      %v318 = vpop.permute.xlu0 %317
      %319 = vrot.lane.b32.xlu0 %v246, 3
      %v320 = vpop.permute.xlu0 %319
      %321 = vrot.lane.b32.xlu0 %v247, 3
      %v322 = vpop.permute.xlu0 %321
      %323 = vrot.lane.b32.xlu0 %v248, 3
      %v324 = vpop.permute.xlu0 %323
      %325 = vrot.lane.b32.xlu0 %v249, 3
      %v326 = vpop.permute.xlu0 %325
      %327 = vrot.lane.b32.xlu0 %v250, 3
      %v328 = vpop.permute.xlu0 %327
      %329 = vrot.lane.b32.xlu0 %v251, 3
      %v330 = vpop.permute.xlu0 %329
      %331 = vrot.lane.b32.xlu0 %v252, 3
      %v332 = vpop.permute.xlu0 %331
      %333 = vrot.lane.b32.xlu0 %v253, 3
      %v334 = vpop.permute.xlu0 %333
      %335 = vrot.lane.b32.xlu0 %v254, 3
      %v336 = vpop.permute.xlu0 %335
      %337 = vrot.lane.b32.xlu0 %v255, 3
      %v338 = vpop.permute.xlu0 %337
      %339 = vrot.lane.b32.xlu0 %v256, 3
      %v340 = vpop.permute.xlu0 %339
      %vm369 = vcmask 48152
      %370 = vst.msk [vmem:[#allocation2] sm:$0xff] %vm369, %v286
      %vm371 = vcmask 46104
      %372 = vst.msk [vmem:[#allocation2 + $0x8] sm:$0x3f] %vm371, %v288
      %373 = vst.msk [vmem:[#allocation2 + $0x10] sm:$0xff] %vm369, %v290
      %374 = vst.msk [vmem:[#allocation2 + $0x18] sm:$0x3f] %vm371, %v292
      %375 = vst.msk [vmem:[#allocation2 + $0x20] sm:$0xff] %vm369, %v294
      %376 = vst.msk [vmem:[#allocation2 + $0x28] sm:$0x3f] %vm371, %v296
      %377 = vst.msk [vmem:[#allocation2 + $0x30] sm:$0xff] %vm369, %v298
      %378 = vst.msk [vmem:[#allocation2 + $0x38] sm:$0x3f] %vm371, %v300
      %379 = vst.msk [vmem:[#allocation2 + $0x40] sm:$0xff] %vm369, %v302
      %380 = vst.msk [vmem:[#allocation2 + $0x48] sm:$0x3f] %vm371, %v304
      %381 = vst.msk [vmem:[#allocation2 + $0x50] sm:$0xff] %vm369, %v306
      %382 = vst.msk [vmem:[#allocation2 + $0x58] sm:$0x3f] %vm371, %v308
      %383 = vst.msk [vmem:[#allocation2 + $0x60] sm:$0xff] %vm369, %v310
      %384 = vst.msk [vmem:[#allocation2 + $0x68] sm:$0x3f] %vm371, %v312
      %385 = vst.msk [vmem:[#allocation2 + $0x70] sm:$0xff] %vm369, %v314
      %386 = vst.msk [vmem:[#allocation2 + $0x78] sm:$0x3f] %vm371, %v316
      %387 = vst.msk [vmem:[#allocation2 + $0x80] sm:$0xff] %vm369, %v318
      %388 = vst.msk [vmem:[#allocation2 + $0x88] sm:$0x3f] %vm371, %v320
      %389 = vst.msk [vmem:[#allocation2 + $0x90] sm:$0xff] %vm369, %v322
      %390 = vst.msk [vmem:[#allocation2 + $0x98] sm:$0x3f] %vm371, %v324
      %391 = vst.msk [vmem:[#allocation2 + $0xa0] sm:$0xff] %vm369, %v326
      %392 = vst.msk [vmem:[#allocation2 + $0xa8] sm:$0x3f] %vm371, %v328
      %393 = vst.msk [vmem:[#allocation2 + $0xb0] sm:$0xff] %vm369, %v330
      %394 = vst.msk [vmem:[#allocation2 + $0xb8] sm:$0x3f] %vm371, %v332
      %395 = vst.msk [vmem:[#allocation2 + $0xc0] sm:$0xff] %vm369, %v334
      %396 = vst.msk [vmem:[#allocation2 + $0xc8] sm:$0x3f] %vm371, %v336
      %397 = vst.msk [vmem:[#allocation2 + $0xd0] sm:$0xff] %vm369, %v338
      %398 = vst.msk [vmem:[#allocation2 + $0xd8] sm:$0x3f] %vm371, %v340
      %v399 = vld [vmem:[%s165 + $0x2] sm:$0xff]
      %v400 = vld [vmem:[%s165 + $0xa] sm:$0x3f]
      %v401 = vld [vmem:[%s165 + $0x12] sm:$0xff]
      %v402 = vld [vmem:[%s165 + $0x1a] sm:$0x3f]
      %v403 = vld [vmem:[%s165 + $0x22] sm:$0xff]
      %v404 = vld [vmem:[%s165 + $0x2a] sm:$0x3f]
      %v405 = vld [vmem:[%s165 + $0x32] sm:$0xff]
      %v406 = vld [vmem:[%s165 + $0x3a] sm:$0x3f]
      %v407 = vld [vmem:[%s165 + $0x42] sm:$0xff]
      %v408 = vld [vmem:[%s165 + $0x4a] sm:$0x3f]
      %v409 = vld [vmem:[%s165 + $0x52] sm:$0xff]
      %v410 = vld [vmem:[%s165 + $0x5a] sm:$0x3f]
      %v411 = vld [vmem:[%s165 + $0x62] sm:$0xff]
      %v412 = vld [vmem:[%s165 + $0x6a] sm:$0x3f]
      %v413 = vld [vmem:[%s165 + $0x72] sm:$0xff]
      %v414 = vld [vmem:[%s165 + $0x7a] sm:$0x3f]
      %v415 = vld [vmem:[%s165 + $0x82] sm:$0xff]
      %v416 = vld [vmem:[%s165 + $0x8a] sm:$0x3f]
      %v417 = vld [vmem:[%s165 + $0x92] sm:$0xff]
      %v418 = vld [vmem:[%s165 + $0x9a] sm:$0x3f]
      %v419 = vld [vmem:[%s165 + $0xa2] sm:$0xff]
      %v420 = vld [vmem:[%s165 + $0xaa] sm:$0x3f]
      %v421 = vld [vmem:[%s165 + $0xb2] sm:$0xff]
      %v422 = vld [vmem:[%s165 + $0xba] sm:$0x3f]
      %v423 = vld [vmem:[%s165 + $0xc2] sm:$0xff]
      %v424 = vld [vmem:[%s165 + $0xca] sm:$0x3f]
      %v425 = vld [vmem:[%s165 + $0xd2] sm:$0xff]
      %v426 = vld [vmem:[%s165 + $0xda] sm:$0x3f]
      %455 = vrot.lane.b32.xlu0 %v399, 6
      %v456 = vpop.permute.xlu0 %455
      %457 = vrot.lane.b32.xlu0 %v400, 6
      %v458 = vpop.permute.xlu0 %457
      %459 = vrot.lane.b32.xlu0 %v401, 6
      %v460 = vpop.permute.xlu0 %459
      %461 = vrot.lane.b32.xlu0 %v402, 6
      %v462 = vpop.permute.xlu0 %461
      %463 = vrot.lane.b32.xlu0 %v403, 6
      %v464 = vpop.permute.xlu0 %463
      %465 = vrot.lane.b32.xlu0 %v404, 6
      %v466 = vpop.permute.xlu0 %465
      %467 = vrot.lane.b32.xlu0 %v405, 6
      %v468 = vpop.permute.xlu0 %467
      %469 = vrot.lane.b32.xlu0 %v406, 6
      %v470 = vpop.permute.xlu0 %469
      %471 = vrot.lane.b32.xlu0 %v407, 6
      %v472 = vpop.permute.xlu0 %471
      %473 = vrot.lane.b32.xlu0 %v408, 6
      %v474 = vpop.permute.xlu0 %473
      %475 = vrot.lane.b32.xlu0 %v409, 6
      %v476 = vpop.permute.xlu0 %475
      %477 = vrot.lane.b32.xlu0 %v410, 6
      %v478 = vpop.permute.xlu0 %477
      %479 = vrot.lane.b32.xlu0 %v411, 6
      %v480 = vpop.permute.xlu0 %479
      %481 = vrot.lane.b32.xlu0 %v412, 6
      %v482 = vpop.permute.xlu0 %481
      %483 = vrot.lane.b32.xlu0 %v413, 6
      %v484 = vpop.permute.xlu0 %483
      %485 = vrot.lane.b32.xlu0 %v414, 6
      %v486 = vpop.permute.xlu0 %485
      %487 = vrot.lane.b32.xlu0 %v415, 6
      %v488 = vpop.permute.xlu0 %487
      %489 = vrot.lane.b32.xlu0 %v416, 6
      %v490 = vpop.permute.xlu0 %489
      %491 = vrot.lane.b32.xlu0 %v417, 6
      %v492 = vpop.permute.xlu0 %491
      %493 = vrot.lane.b32.xlu0 %v418, 6
      %v494 = vpop.permute.xlu0 %493
      %495 = vrot.lane.b32.xlu0 %v419, 6
      %v496 = vpop.permute.xlu0 %495
      %497 = vrot.lane.b32.xlu0 %v420, 6
      %v498 = vpop.permute.xlu0 %497
      %499 = vrot.lane.b32.xlu0 %v421, 6
      %v500 = vpop.permute.xlu0 %499
      %501 = vrot.lane.b32.xlu0 %v422, 6
      %v502 = vpop.permute.xlu0 %501
      %503 = vrot.lane.b32.xlu0 %v423, 6
      %v504 = vpop.permute.xlu0 %503
      %505 = vrot.lane.b32.xlu0 %v424, 6
      %v506 = vpop.permute.xlu0 %505
      %507 = vrot.lane.b32.xlu0 %v425, 6
      %v508 = vpop.permute.xlu0 %507
      %509 = vrot.lane.b32.xlu0 %v426, 6
      %v510 = vpop.permute.xlu0 %509
      %vm539 = vcmask 72752
      %540 = vst.msk [vmem:[#allocation2] sm:$0xff] %vm539, %v456
      %vm541 = vcmask 70704
      %542 = vst.msk [vmem:[#allocation2 + $0x8] sm:$0x3f] %vm541, %v458
      %543 = vst.msk [vmem:[#allocation2 + $0x10] sm:$0xff] %vm539, %v460
      %544 = vst.msk [vmem:[#allocation2 + $0x18] sm:$0x3f] %vm541, %v462
      %545 = vst.msk [vmem:[#allocation2 + $0x20] sm:$0xff] %vm539, %v464
      %546 = vst.msk [vmem:[#allocation2 + $0x28] sm:$0x3f] %vm541, %v466
      %547 = vst.msk [vmem:[#allocation2 + $0x30] sm:$0xff] %vm539, %v468
      %548 = vst.msk [vmem:[#allocation2 + $0x38] sm:$0x3f] %vm541, %v470
      %549 = vst.msk [vmem:[#allocation2 + $0x40] sm:$0xff] %vm539, %v472
      %550 = vst.msk [vmem:[#allocation2 + $0x48] sm:$0x3f] %vm541, %v474
      %551 = vst.msk [vmem:[#allocation2 + $0x50] sm:$0xff] %vm539, %v476
      %552 = vst.msk [vmem:[#allocation2 + $0x58] sm:$0x3f] %vm541, %v478
      %553 = vst.msk [vmem:[#allocation2 + $0x60] sm:$0xff] %vm539, %v480
      %554 = vst.msk [vmem:[#allocation2 + $0x68] sm:$0x3f] %vm541, %v482
      %555 = vst.msk [vmem:[#allocation2 + $0x70] sm:$0xff] %vm539, %v484
      %556 = vst.msk [vmem:[#allocation2 + $0x78] sm:$0x3f] %vm541, %v486
      %557 = vst.msk [vmem:[#allocation2 + $0x80] sm:$0xff] %vm539, %v488
      %558 = vst.msk [vmem:[#allocation2 + $0x88] sm:$0x3f] %vm541, %v490
      %559 = vst.msk [vmem:[#allocation2 + $0x90] sm:$0xff] %vm539, %v492
      %560 = vst.msk [vmem:[#allocation2 + $0x98] sm:$0x3f] %vm541, %v494
      %561 = vst.msk [vmem:[#allocation2 + $0xa0] sm:$0xff] %vm539, %v496
      %562 = vst.msk [vmem:[#allocation2 + $0xa8] sm:$0x3f] %vm541, %v498
      %563 = vst.msk [vmem:[#allocation2 + $0xb0] sm:$0xff] %vm539, %v500
      %564 = vst.msk [vmem:[#allocation2 + $0xb8] sm:$0x3f] %vm541, %v502
      %565 = vst.msk [vmem:[#allocation2 + $0xc0] sm:$0xff] %vm539, %v504
      %566 = vst.msk [vmem:[#allocation2 + $0xc8] sm:$0x3f] %vm541, %v506
      %567 = vst.msk [vmem:[#allocation2 + $0xd0] sm:$0xff] %vm539, %v508
      %568 = vst.msk [vmem:[#allocation2 + $0xd8] sm:$0x3f] %vm541, %v510
      %s569 = scalar_lea.vmem %s165, 16
      %v570 = vld [vmem:[%s569] sm:$0xff]
      %v571 = vld [vmem:[%s569 + $0x8] sm:$0x3f]
      %v572 = vld [vmem:[%s569 + $0x10] sm:$0xff]
      %v573 = vld [vmem:[%s569 + $0x18] sm:$0x3f]
      %v574 = vld [vmem:[%s569 + $0x20] sm:$0xff]
      %v575 = vld [vmem:[%s569 + $0x28] sm:$0x3f]
      %v576 = vld [vmem:[%s569 + $0x30] sm:$0xff]
      %v577 = vld [vmem:[%s569 + $0x38] sm:$0x3f]
      %v578 = vld [vmem:[%s569 + $0x40] sm:$0xff]
      %v579 = vld [vmem:[%s569 + $0x48] sm:$0x3f]
      %v580 = vld [vmem:[%s569 + $0x50] sm:$0xff]
      %v581 = vld [vmem:[%s569 + $0x58] sm:$0x3f]
      %v582 = vld [vmem:[%s569 + $0x60] sm:$0xff]
      %v583 = vld [vmem:[%s569 + $0x68] sm:$0x3f]
      %v584 = vld [vmem:[%s569 + $0x70] sm:$0xff]
      %v585 = vld [vmem:[%s569 + $0x78] sm:$0x3f]
      %v586 = vld [vmem:[%s569 + $0x80] sm:$0xff]
      %v587 = vld [vmem:[%s569 + $0x88] sm:$0x3f]
      %v588 = vld [vmem:[%s569 + $0x90] sm:$0xff]
      %v589 = vld [vmem:[%s569 + $0x98] sm:$0x3f]
      %v590 = vld [vmem:[%s569 + $0xa0] sm:$0xff]
      %v591 = vld [vmem:[%s569 + $0xa8] sm:$0x3f]
      %v592 = vld [vmem:[%s569 + $0xb0] sm:$0xff]
      %v593 = vld [vmem:[%s569 + $0xb8] sm:$0x3f]
      %v594 = vld [vmem:[%s569 + $0xc0] sm:$0xff]
      %v595 = vld [vmem:[%s569 + $0xc8] sm:$0x3f]
      %v596 = vld [vmem:[%s569 + $0xd0] sm:$0xff]
      %v597 = vld [vmem:[%s569 + $0xd8] sm:$0x3f]
      %626 = vrot.lane.b32.xlu0 %v570, 9
      %v627 = vpop.permute.xlu0 %626
      %628 = vrot.lane.b32.xlu0 %v571, 9
      %v629 = vpop.permute.xlu0 %628
      %630 = vrot.lane.b32.xlu0 %v572, 9
      %v631 = vpop.permute.xlu0 %630
      %632 = vrot.lane.b32.xlu0 %v573, 9
      %v633 = vpop.permute.xlu0 %632
      %634 = vrot.lane.b32.xlu0 %v574, 9
      %v635 = vpop.permute.xlu0 %634
      %636 = vrot.lane.b32.xlu0 %v575, 9
      %v637 = vpop.permute.xlu0 %636
      %638 = vrot.lane.b32.xlu0 %v576, 9
      %v639 = vpop.permute.xlu0 %638
      %640 = vrot.lane.b32.xlu0 %v577, 9
      %v641 = vpop.permute.xlu0 %640
      %642 = vrot.lane.b32.xlu0 %v578, 9
      %v643 = vpop.permute.xlu0 %642
      %644 = vrot.lane.b32.xlu0 %v579, 9
      %v645 = vpop.permute.xlu0 %644
      %646 = vrot.lane.b32.xlu0 %v580, 9
      %v647 = vpop.permute.xlu0 %646
      %648 = vrot.lane.b32.xlu0 %v581, 9
      %v649 = vpop.permute.xlu0 %648
      %650 = vrot.lane.b32.xlu0 %v582, 9
      %v651 = vpop.permute.xlu0 %650
      %652 = vrot.lane.b32.xlu0 %v583, 9
      %v653 = vpop.permute.xlu0 %652
      %654 = vrot.lane.b32.xlu0 %v584, 9
      %v655 = vpop.permute.xlu0 %654
      %656 = vrot.lane.b32.xlu0 %v585, 9
      %v657 = vpop.permute.xlu0 %656
      %658 = vrot.lane.b32.xlu0 %v586, 9
      %v659 = vpop.permute.xlu0 %658
      %660 = vrot.lane.b32.xlu0 %v587, 9
      %v661 = vpop.permute.xlu0 %660
      %662 = vrot.lane.b32.xlu0 %v588, 9
      %v663 = vpop.permute.xlu0 %662
      %664 = vrot.lane.b32.xlu0 %v589, 9
      %v665 = vpop.permute.xlu0 %664
      %666 = vrot.lane.b32.xlu0 %v590, 9
      %v667 = vpop.permute.xlu0 %666
      %668 = vrot.lane.b32.xlu0 %v591, 9
      %v669 = vpop.permute.xlu0 %668
      %670 = vrot.lane.b32.xlu0 %v592, 9
      %v671 = vpop.permute.xlu0 %670
      %672 = vrot.lane.b32.xlu0 %v593, 9
      %v673 = vpop.permute.xlu0 %672
      %674 = vrot.lane.b32.xlu0 %v594, 9
      %v675 = vpop.permute.xlu0 %674
      %676 = vrot.lane.b32.xlu0 %v595, 9
      %v677 = vpop.permute.xlu0 %676
      %678 = vrot.lane.b32.xlu0 %v596, 9
      %v679 = vpop.permute.xlu0 %678
      %680 = vrot.lane.b32.xlu0 %v597, 9
      %v681 = vpop.permute.xlu0 %680
      %vm710 = vcmask 97352
      %711 = vst.msk [vmem:[#allocation2] sm:$0xff] %vm710, %v627
      %vm712 = vcmask 95304
      %713 = vst.msk [vmem:[#allocation2 + $0x8] sm:$0x3f] %vm712, %v629
      %714 = vst.msk [vmem:[#allocation2 + $0x10] sm:$0xff] %vm710, %v631
      %715 = vst.msk [vmem:[#allocation2 + $0x18] sm:$0x3f] %vm712, %v633
      %716 = vst.msk [vmem:[#allocation2 + $0x20] sm:$0xff] %vm710, %v635
      %717 = vst.msk [vmem:[#allocation2 + $0x28] sm:$0x3f] %vm712, %v637
      %718 = vst.msk [vmem:[#allocation2 + $0x30] sm:$0xff] %vm710, %v639
      %719 = vst.msk [vmem:[#allocation2 + $0x38] sm:$0x3f] %vm712, %v641
      %720 = vst.msk [vmem:[#allocation2 + $0x40] sm:$0xff] %vm710, %v643
      %721 = vst.msk [vmem:[#allocation2 + $0x48] sm:$0x3f] %vm712, %v645
      %722 = vst.msk [vmem:[#allocation2 + $0x50] sm:$0xff] %vm710, %v647
      %723 = vst.msk [vmem:[#allocation2 + $0x58] sm:$0x3f] %vm712, %v649
      %724 = vst.msk [vmem:[#allocation2 + $0x60] sm:$0xff] %vm710, %v651
      %725 = vst.msk [vmem:[#allocation2 + $0x68] sm:$0x3f] %vm712, %v653
      %726 = vst.msk [vmem:[#allocation2 + $0x70] sm:$0xff] %vm710, %v655
      %727 = vst.msk [vmem:[#allocation2 + $0x78] sm:$0x3f] %vm712, %v657
      %728 = vst.msk [vmem:[#allocation2 + $0x80] sm:$0xff] %vm710, %v659
      %729 = vst.msk [vmem:[#allocation2 + $0x88] sm:$0x3f] %vm712, %v661
      %730 = vst.msk [vmem:[#allocation2 + $0x90] sm:$0xff] %vm710, %v663
      %731 = vst.msk [vmem:[#allocation2 + $0x98] sm:$0x3f] %vm712, %v665
      %732 = vst.msk [vmem:[#allocation2 + $0xa0] sm:$0xff] %vm710, %v667
      %733 = vst.msk [vmem:[#allocation2 + $0xa8] sm:$0x3f] %vm712, %v669
      %734 = vst.msk [vmem:[#allocation2 + $0xb0] sm:$0xff] %vm710, %v671
      %735 = vst.msk [vmem:[#allocation2 + $0xb8] sm:$0x3f] %vm712, %v673
      %736 = vst.msk [vmem:[#allocation2 + $0xc0] sm:$0xff] %vm710, %v675
      %737 = vst.msk [vmem:[#allocation2 + $0xc8] sm:$0x3f] %vm712, %v677
      %738 = vst.msk [vmem:[#allocation2 + $0xd0] sm:$0xff] %vm710, %v679
      %739 = vst.msk [vmem:[#allocation2 + $0xd8] sm:$0x3f] %vm712, %v681
      %v740 = vld [vmem:[%s569 + $0x1] sm:$0xff]
      %v741 = vld [vmem:[%s569 + $0x9] sm:$0x3f]
      %v742 = vld [vmem:[%s569 + $0x11] sm:$0xff]
      %v743 = vld [vmem:[%s569 + $0x19] sm:$0x3f]
      %v744 = vld [vmem:[%s569 + $0x21] sm:$0xff]
      %v745 = vld [vmem:[%s569 + $0x29] sm:$0x3f]
      %v746 = vld [vmem:[%s569 + $0x31] sm:$0xff]
      %v747 = vld [vmem:[%s569 + $0x39] sm:$0x3f]
      %v748 = vld [vmem:[%s569 + $0x41] sm:$0xff]
      %v749 = vld [vmem:[%s569 + $0x49] sm:$0x3f]
      %v750 = vld [vmem:[%s569 + $0x51] sm:$0xff]
      %v751 = vld [vmem:[%s569 + $0x59] sm:$0x3f]
      %v752 = vld [vmem:[%s569 + $0x61] sm:$0xff]
      %v753 = vld [vmem:[%s569 + $0x69] sm:$0x3f]
      %v754 = vld [vmem:[%s569 + $0x71] sm:$0xff]
      %v755 = vld [vmem:[%s569 + $0x79] sm:$0x3f]
      %v756 = vld [vmem:[%s569 + $0x81] sm:$0xff]
      %v757 = vld [vmem:[%s569 + $0x89] sm:$0x3f]
      %v758 = vld [vmem:[%s569 + $0x91] sm:$0xff]
      %v759 = vld [vmem:[%s569 + $0x99] sm:$0x3f]
      %v760 = vld [vmem:[%s569 + $0xa1] sm:$0xff]
      %v761 = vld [vmem:[%s569 + $0xa9] sm:$0x3f]
      %v762 = vld [vmem:[%s569 + $0xb1] sm:$0xff]
      %v763 = vld [vmem:[%s569 + $0xb9] sm:$0x3f]
      %v764 = vld [vmem:[%s569 + $0xc1] sm:$0xff]
      %v765 = vld [vmem:[%s569 + $0xc9] sm:$0x3f]
      %v766 = vld [vmem:[%s569 + $0xd1] sm:$0xff]
      %v767 = vld [vmem:[%s569 + $0xd9] sm:$0x3f]
      %796 = vrot.lane.b32.xlu0 %v740, 12
      %v797 = vpop.permute.xlu0 %796
      %798 = vrot.lane.b32.xlu0 %v741, 12
      %v799 = vpop.permute.xlu0 %798
      %800 = vrot.lane.b32.xlu0 %v742, 12
      %v801 = vpop.permute.xlu0 %800
      %802 = vrot.lane.b32.xlu0 %v743, 12
      %v803 = vpop.permute.xlu0 %802
      %804 = vrot.lane.b32.xlu0 %v744, 12
      %v805 = vpop.permute.xlu0 %804
      %806 = vrot.lane.b32.xlu0 %v745, 12
      %v807 = vpop.permute.xlu0 %806
      %808 = vrot.lane.b32.xlu0 %v746, 12
      %v809 = vpop.permute.xlu0 %808
      %810 = vrot.lane.b32.xlu0 %v747, 12
      %v811 = vpop.permute.xlu0 %810
      %812 = vrot.lane.b32.xlu0 %v748, 12
      %v813 = vpop.permute.xlu0 %812
      %814 = vrot.lane.b32.xlu0 %v749, 12
      %v815 = vpop.permute.xlu0 %814
      %816 = vrot.lane.b32.xlu0 %v750, 12
      %v817 = vpop.permute.xlu0 %816
      %818 = vrot.lane.b32.xlu0 %v751, 12
      %v819 = vpop.permute.xlu0 %818
      %820 = vrot.lane.b32.xlu0 %v752, 12
      %v821 = vpop.permute.xlu0 %820
      %822 = vrot.lane.b32.xlu0 %v753, 12
      %v823 = vpop.permute.xlu0 %822
      %824 = vrot.lane.b32.xlu0 %v754, 12
      %v825 = vpop.permute.xlu0 %824
      %826 = vrot.lane.b32.xlu0 %v755, 12
      %v827 = vpop.permute.xlu0 %826
      %828 = vrot.lane.b32.xlu0 %v756, 12
      %v829 = vpop.permute.xlu0 %828
      %830 = vrot.lane.b32.xlu0 %v757, 12
      %v831 = vpop.permute.xlu0 %830
      %832 = vrot.lane.b32.xlu0 %v758, 12
      %v833 = vpop.permute.xlu0 %832
      %834 = vrot.lane.b32.xlu0 %v759, 12
      %v835 = vpop.permute.xlu0 %834
      %836 = vrot.lane.b32.xlu0 %v760, 12
      %v837 = vpop.permute.xlu0 %836
      %838 = vrot.lane.b32.xlu0 %v761, 12
      %v839 = vpop.permute.xlu0 %838
      %840 = vrot.lane.b32.xlu0 %v762, 12
      %v841 = vpop.permute.xlu0 %840
      %842 = vrot.lane.b32.xlu0 %v763, 12
      %v843 = vpop.permute.xlu0 %842
      %844 = vrot.lane.b32.xlu0 %v764, 12
      %v845 = vpop.permute.xlu0 %844
      %846 = vrot.lane.b32.xlu0 %v765, 12
      %v847 = vpop.permute.xlu0 %846
      %848 = vrot.lane.b32.xlu0 %v766, 12
      %v849 = vpop.permute.xlu0 %848
      %850 = vrot.lane.b32.xlu0 %v767, 12
      %v851 = vpop.permute.xlu0 %850
      %vm880 = vcmask 121952
      %881 = vst.msk [vmem:[#allocation2] sm:$0xff] %vm880, %v797
      %vm882 = vcmask 119904
      %883 = vst.msk [vmem:[#allocation2 + $0x8] sm:$0x3f] %vm882, %v799
      %884 = vst.msk [vmem:[#allocation2 + $0x10] sm:$0xff] %vm880, %v801
      %885 = vst.msk [vmem:[#allocation2 + $0x18] sm:$0x3f] %vm882, %v803
      %886 = vst.msk [vmem:[#allocation2 + $0x20] sm:$0xff] %vm880, %v805
      %887 = vst.msk [vmem:[#allocation2 + $0x28] sm:$0x3f] %vm882, %v807
      %888 = vst.msk [vmem:[#allocation2 + $0x30] sm:$0xff] %vm880, %v809
      %889 = vst.msk [vmem:[#allocation2 + $0x38] sm:$0x3f] %vm882, %v811
      %890 = vst.msk [vmem:[#allocation2 + $0x40] sm:$0xff] %vm880, %v813
      %891 = vst.msk [vmem:[#allocation2 + $0x48] sm:$0x3f] %vm882, %v815
      %892 = vst.msk [vmem:[#allocation2 + $0x50] sm:$0xff] %vm880, %v817
      %893 = vst.msk [vmem:[#allocation2 + $0x58] sm:$0x3f] %vm882, %v819
      %894 = vst.msk [vmem:[#allocation2 + $0x60] sm:$0xff] %vm880, %v821
      %895 = vst.msk [vmem:[#allocation2 + $0x68] sm:$0x3f] %vm882, %v823
      %896 = vst.msk [vmem:[#allocation2 + $0x70] sm:$0xff] %vm880, %v825
      %897 = vst.msk [vmem:[#allocation2 + $0x78] sm:$0x3f] %vm882, %v827
      %898 = vst.msk [vmem:[#allocation2 + $0x80] sm:$0xff] %vm880, %v829
      %899 = vst.msk [vmem:[#allocation2 + $0x88] sm:$0x3f] %vm882, %v831
      %900 = vst.msk [vmem:[#allocation2 + $0x90] sm:$0xff] %vm880, %v833
      %901 = vst.msk [vmem:[#allocation2 + $0x98] sm:$0x3f] %vm882, %v835
      %902 = vst.msk [vmem:[#allocation2 + $0xa0] sm:$0xff] %vm880, %v837
      %903 = vst.msk [vmem:[#allocation2 + $0xa8] sm:$0x3f] %vm882, %v839
      %904 = vst.msk [vmem:[#allocation2 + $0xb0] sm:$0xff] %vm880, %v841
      %905 = vst.msk [vmem:[#allocation2 + $0xb8] sm:$0x3f] %vm882, %v843
      %906 = vst.msk [vmem:[#allocation2 + $0xc0] sm:$0xff] %vm880, %v845
      %907 = vst.msk [vmem:[#allocation2 + $0xc8] sm:$0x3f] %vm882, %v847
      %908 = vst.msk [vmem:[#allocation2 + $0xd0] sm:$0xff] %vm880, %v849
      %909 = vst.msk [vmem:[#allocation2 + $0xd8] sm:$0x3f] %vm882, %v851
      %v910 = vld [vmem:[%s569 + $0x2] sm:$0xff]
      %v911 = vld [vmem:[%s569 + $0xa] sm:$0x3f]
      %v912 = vld [vmem:[%s569 + $0x12] sm:$0xff]
      %v913 = vld [vmem:[%s569 + $0x1a] sm:$0x3f]
      %v914 = vld [vmem:[%s569 + $0x22] sm:$0xff]
      %v915 = vld [vmem:[%s569 + $0x2a] sm:$0x3f]
      %v916 = vld [vmem:[%s569 + $0x32] sm:$0xff]
      %v917 = vld [vmem:[%s569 + $0x3a] sm:$0x3f]
      %v918 = vld [vmem:[%s569 + $0x42] sm:$0xff]
      %v919 = vld [vmem:[%s569 + $0x4a] sm:$0x3f]
      %v920 = vld [vmem:[%s569 + $0x52] sm:$0xff]
      %v921 = vld [vmem:[%s569 + $0x5a] sm:$0x3f]
      %v922 = vld [vmem:[%s569 + $0x62] sm:$0xff]
      %v923 = vld [vmem:[%s569 + $0x6a] sm:$0x3f]
      %v924 = vld [vmem:[%s569 + $0x72] sm:$0xff]
      %v925 = vld [vmem:[%s569 + $0x7a] sm:$0x3f]
      %v926 = vld [vmem:[%s569 + $0x82] sm:$0xff]
      %v927 = vld [vmem:[%s569 + $0x8a] sm:$0x3f]
      %v928 = vld [vmem:[%s569 + $0x92] sm:$0xff]
      %v929 = vld [vmem:[%s569 + $0x9a] sm:$0x3f]
      %v930 = vld [vmem:[%s569 + $0xa2] sm:$0xff]
      %v931 = vld [vmem:[%s569 + $0xaa] sm:$0x3f]
      %v932 = vld [vmem:[%s569 + $0xb2] sm:$0xff]
      %v933 = vld [vmem:[%s569 + $0xba] sm:$0x3f]
      %v934 = vld [vmem:[%s569 + $0xc2] sm:$0xff]
      %v935 = vld [vmem:[%s569 + $0xca] sm:$0x3f]
      %v936 = vld [vmem:[%s569 + $0xd2] sm:$0xff]
      %v937 = vld [vmem:[%s569 + $0xda] sm:$0x3f]
      %966 = vrot.lane.b32.xlu0 %v910, 15
      %v967 = vpop.permute.xlu0 %966
      %968 = vrot.lane.b32.xlu0 %v911, 15
      %v969 = vpop.permute.xlu0 %968
      %970 = vrot.lane.b32.xlu0 %v912, 15
      %v971 = vpop.permute.xlu0 %970
      %972 = vrot.lane.b32.xlu0 %v913, 15
      %v973 = vpop.permute.xlu0 %972
      %974 = vrot.lane.b32.xlu0 %v914, 15
      %v975 = vpop.permute.xlu0 %974
      %976 = vrot.lane.b32.xlu0 %v915, 15
      %v977 = vpop.permute.xlu0 %976
      %978 = vrot.lane.b32.xlu0 %v916, 15
      %v979 = vpop.permute.xlu0 %978
      %980 = vrot.lane.b32.xlu0 %v917, 15
      %v981 = vpop.permute.xlu0 %980
      %982 = vrot.lane.b32.xlu0 %v918, 15
      %v983 = vpop.permute.xlu0 %982
      %984 = vrot.lane.b32.xlu0 %v919, 15
      %v985 = vpop.permute.xlu0 %984
      %986 = vrot.lane.b32.xlu0 %v920, 15
      %v987 = vpop.permute.xlu0 %986
      %988 = vrot.lane.b32.xlu0 %v921, 15
      %v989 = vpop.permute.xlu0 %988
      %990 = vrot.lane.b32.xlu0 %v922, 15
      %v991 = vpop.permute.xlu0 %990
      %992 = vrot.lane.b32.xlu0 %v923, 15
      %v993 = vpop.permute.xlu0 %992
      %994 = vrot.lane.b32.xlu0 %v924, 15
      %v995 = vpop.permute.xlu0 %994
      %996 = vrot.lane.b32.xlu0 %v925, 15
      %v997 = vpop.permute.xlu0 %996
      %998 = vrot.lane.b32.xlu0 %v926, 15
      %v999 = vpop.permute.xlu0 %998
      %1000 = vrot.lane.b32.xlu0 %v927, 15
      %v1001 = vpop.permute.xlu0 %1000
      %1002 = vrot.lane.b32.xlu0 %v928, 15
      %v1003 = vpop.permute.xlu0 %1002
      %1004 = vrot.lane.b32.xlu0 %v929, 15
      %v1005 = vpop.permute.xlu0 %1004
      %1006 = vrot.lane.b32.xlu0 %v930, 15
      %v1007 = vpop.permute.xlu0 %1006
      %1008 = vrot.lane.b32.xlu0 %v931, 15
      %v1009 = vpop.permute.xlu0 %1008
      %1010 = vrot.lane.b32.xlu0 %v932, 15
      %v1011 = vpop.permute.xlu0 %1010
      %1012 = vrot.lane.b32.xlu0 %v933, 15
      %v1013 = vpop.permute.xlu0 %1012
      %1014 = vrot.lane.b32.xlu0 %v934, 15
      %v1015 = vpop.permute.xlu0 %1014
      %1016 = vrot.lane.b32.xlu0 %v935, 15
      %v1017 = vpop.permute.xlu0 %1016
      %1018 = vrot.lane.b32.xlu0 %v936, 15
      %v1019 = vpop.permute.xlu0 %1018
      %1020 = vrot.lane.b32.xlu0 %v937, 15
      %v1021 = vpop.permute.xlu0 %1020
      %vm1050 = vcmask 146552
      %1051 = vst.msk [vmem:[#allocation2] sm:$0xff] %vm1050, %v967
      %vm1052 = vcmask 144504
      %1053 = vst.msk [vmem:[#allocation2 + $0x8] sm:$0x3f] %vm1052, %v969
      %1054 = vst.msk [vmem:[#allocation2 + $0x10] sm:$0xff] %vm1050, %v971
      %1055 = vst.msk [vmem:[#allocation2 + $0x18] sm:$0x3f] %vm1052, %v973
      %1056 = vst.msk [vmem:[#allocation2 + $0x20] sm:$0xff] %vm1050, %v975
      %1057 = vst.msk [vmem:[#allocation2 + $0x28] sm:$0x3f] %vm1052, %v977
      %1058 = vst.msk [vmem:[#allocation2 + $0x30] sm:$0xff] %vm1050, %v979
      %1059 = vst.msk [vmem:[#allocation2 + $0x38] sm:$0x3f] %vm1052, %v981
      %1060 = vst.msk [vmem:[#allocation2 + $0x40] sm:$0xff] %vm1050, %v983
      %1061 = vst.msk [vmem:[#allocation2 + $0x48] sm:$0x3f] %vm1052, %v985
      %1062 = vst.msk [vmem:[#allocation2 + $0x50] sm:$0xff] %vm1050, %v987
      %1063 = vst.msk [vmem:[#allocation2 + $0x58] sm:$0x3f] %vm1052, %v989
      %1064 = vst.msk [vmem:[#allocation2 + $0x60] sm:$0xff] %vm1050, %v991
      %1065 = vst.msk [vmem:[#allocation2 + $0x68] sm:$0x3f] %vm1052, %v993
      %1066 = vst.msk [vmem:[#allocation2 + $0x70] sm:$0xff] %vm1050, %v995
      %1067 = vst.msk [vmem:[#allocation2 + $0x78] sm:$0x3f] %vm1052, %v997
      %1068 = vst.msk [vmem:[#allocation2 + $0x80] sm:$0xff] %vm1050, %v999
      %1069 = vst.msk [vmem:[#allocation2 + $0x88] sm:$0x3f] %vm1052, %v1001
      %1070 = vst.msk [vmem:[#allocation2 + $0x90] sm:$0xff] %vm1050, %v1003
      %1071 = vst.msk [vmem:[#allocation2 + $0x98] sm:$0x3f] %vm1052, %v1005
      %1072 = vst.msk [vmem:[#allocation2 + $0xa0] sm:$0xff] %vm1050, %v1007
      %1073 = vst.msk [vmem:[#allocation2 + $0xa8] sm:$0x3f] %vm1052, %v1009
      %1074 = vst.msk [vmem:[#allocation2 + $0xb0] sm:$0xff] %vm1050, %v1011
      %1075 = vst.msk [vmem:[#allocation2 + $0xb8] sm:$0x3f] %vm1052, %v1013
      %1076 = vst.msk [vmem:[#allocation2 + $0xc0] sm:$0xff] %vm1050, %v1015
      %1077 = vst.msk [vmem:[#allocation2 + $0xc8] sm:$0x3f] %vm1052, %v1017
      %1078 = vst.msk [vmem:[#allocation2 + $0xd0] sm:$0xff] %vm1050, %v1019
      %1079 = vst.msk [vmem:[#allocation2 + $0xd8] sm:$0x3f] %vm1052, %v1021
      %s1080 = scalar_lea.vmem %s165, 32
      %v1081 = vld [vmem:[%s1080] sm:$0xff]
      %v1082 = vld [vmem:[%s1080 + $0x8] sm:$0x3f]
      %v1083 = vld [vmem:[%s1080 + $0x10] sm:$0xff]
      %v1084 = vld [vmem:[%s1080 + $0x18] sm:$0x3f]
      %v1085 = vld [vmem:[%s1080 + $0x20] sm:$0xff]
      %v1086 = vld [vmem:[%s1080 + $0x28] sm:$0x3f]
      %v1087 = vld [vmem:[%s1080 + $0x30] sm:$0xff]
      %v1088 = vld [vmem:[%s1080 + $0x38] sm:$0x3f]
      %v1089 = vld [vmem:[%s1080 + $0x40] sm:$0xff]
      %v1090 = vld [vmem:[%s1080 + $0x48] sm:$0x3f]
      %v1091 = vld [vmem:[%s1080 + $0x50] sm:$0xff]
      %v1092 = vld [vmem:[%s1080 + $0x58] sm:$0x3f]
      %v1093 = vld [vmem:[%s1080 + $0x60] sm:$0xff]
      %v1094 = vld [vmem:[%s1080 + $0x68] sm:$0x3f]
      %v1095 = vld [vmem:[%s1080 + $0x70] sm:$0xff]
      %v1096 = vld [vmem:[%s1080 + $0x78] sm:$0x3f]
      %v1097 = vld [vmem:[%s1080 + $0x80] sm:$0xff]
      %v1098 = vld [vmem:[%s1080 + $0x88] sm:$0x3f]
      %v1099 = vld [vmem:[%s1080 + $0x90] sm:$0xff]
      %v1100 = vld [vmem:[%s1080 + $0x98] sm:$0x3f]
      %v1101 = vld [vmem:[%s1080 + $0xa0] sm:$0xff]
      %v1102 = vld [vmem:[%s1080 + $0xa8] sm:$0x3f]
      %v1103 = vld [vmem:[%s1080 + $0xb0] sm:$0xff]
      %v1104 = vld [vmem:[%s1080 + $0xb8] sm:$0x3f]
      %v1105 = vld [vmem:[%s1080 + $0xc0] sm:$0xff]
      %v1106 = vld [vmem:[%s1080 + $0xc8] sm:$0x3f]
      %v1107 = vld [vmem:[%s1080 + $0xd0] sm:$0xff]
      %v1108 = vld [vmem:[%s1080 + $0xd8] sm:$0x3f]
      %1137 = vrot.lane.b32.xlu0 %v1081, 18
      %v1138 = vpop.permute.xlu0 %1137
      %1139 = vrot.lane.b32.xlu0 %v1082, 18
      %v1140 = vpop.permute.xlu0 %1139
      %1141 = vrot.lane.b32.xlu0 %v1083, 18
      %v1142 = vpop.permute.xlu0 %1141
      %1143 = vrot.lane.b32.xlu0 %v1084, 18
      %v1144 = vpop.permute.xlu0 %1143
      %1145 = vrot.lane.b32.xlu0 %v1085, 18
      %v1146 = vpop.permute.xlu0 %1145
      %1147 = vrot.lane.b32.xlu0 %v1086, 18
      %v1148 = vpop.permute.xlu0 %1147
      %1149 = vrot.lane.b32.xlu0 %v1087, 18
      %v1150 = vpop.permute.xlu0 %1149
      %1151 = vrot.lane.b32.xlu0 %v1088, 18
      %v1152 = vpop.permute.xlu0 %1151
      %1153 = vrot.lane.b32.xlu0 %v1089, 18
      %v1154 = vpop.permute.xlu0 %1153
      %1155 = vrot.lane.b32.xlu0 %v1090, 18
      %v1156 = vpop.permute.xlu0 %1155
      %1157 = vrot.lane.b32.xlu0 %v1091, 18
      %v1158 = vpop.permute.xlu0 %1157
      %1159 = vrot.lane.b32.xlu0 %v1092, 18
      %v1160 = vpop.permute.xlu0 %1159
      %1161 = vrot.lane.b32.xlu0 %v1093, 18
      %v1162 = vpop.permute.xlu0 %1161
      %1163 = vrot.lane.b32.xlu0 %v1094, 18
      %v1164 = vpop.permute.xlu0 %1163
      %1165 = vrot.lane.b32.xlu0 %v1095, 18
      %v1166 = vpop.permute.xlu0 %1165
      %1167 = vrot.lane.b32.xlu0 %v1096, 18
      %v1168 = vpop.permute.xlu0 %1167
      %1169 = vrot.lane.b32.xlu0 %v1097, 18
      %v1170 = vpop.permute.xlu0 %1169
      %1171 = vrot.lane.b32.xlu0 %v1098, 18
      %v1172 = vpop.permute.xlu0 %1171
      %1173 = vrot.lane.b32.xlu0 %v1099, 18
      %v1174 = vpop.permute.xlu0 %1173
      %1175 = vrot.lane.b32.xlu0 %v1100, 18
      %v1176 = vpop.permute.xlu0 %1175
      %1177 = vrot.lane.b32.xlu0 %v1101, 18
      %v1178 = vpop.permute.xlu0 %1177
      %1179 = vrot.lane.b32.xlu0 %v1102, 18
      %v1180 = vpop.permute.xlu0 %1179
      %1181 = vrot.lane.b32.xlu0 %v1103, 18
      %v1182 = vpop.permute.xlu0 %1181
      %1183 = vrot.lane.b32.xlu0 %v1104, 18
      %v1184 = vpop.permute.xlu0 %1183
      %1185 = vrot.lane.b32.xlu0 %v1105, 18
      %v1186 = vpop.permute.xlu0 %1185
      %1187 = vrot.lane.b32.xlu0 %v1106, 18
      %v1188 = vpop.permute.xlu0 %1187
      %1189 = vrot.lane.b32.xlu0 %v1107, 18
      %v1190 = vpop.permute.xlu0 %1189
      %1191 = vrot.lane.b32.xlu0 %v1108, 18
      %v1192 = vpop.permute.xlu0 %1191
      %vm1221 = vcmask 171152
      %1222 = vst.msk [vmem:[#allocation2] sm:$0xff] %vm1221, %v1138
      %vm1223 = vcmask 169104
      %1224 = vst.msk [vmem:[#allocation2 + $0x8] sm:$0x3f] %vm1223, %v1140
      %1225 = vst.msk [vmem:[#allocation2 + $0x10] sm:$0xff] %vm1221, %v1142
      %1226 = vst.msk [vmem:[#allocation2 + $0x18] sm:$0x3f] %vm1223, %v1144
      %1227 = vst.msk [vmem:[#allocation2 + $0x20] sm:$0xff] %vm1221, %v1146
      %1228 = vst.msk [vmem:[#allocation2 + $0x28] sm:$0x3f] %vm1223, %v1148
      %1229 = vst.msk [vmem:[#allocation2 + $0x30] sm:$0xff] %vm1221, %v1150
      %1230 = vst.msk [vmem:[#allocation2 + $0x38] sm:$0x3f] %vm1223, %v1152
      %1231 = vst.msk [vmem:[#allocation2 + $0x40] sm:$0xff] %vm1221, %v1154
      %1232 = vst.msk [vmem:[#allocation2 + $0x48] sm:$0x3f] %vm1223, %v1156
      %1233 = vst.msk [vmem:[#allocation2 + $0x50] sm:$0xff] %vm1221, %v1158
      %1234 = vst.msk [vmem:[#allocation2 + $0x58] sm:$0x3f] %vm1223, %v1160
      %1235 = vst.msk [vmem:[#allocation2 + $0x60] sm:$0xff] %vm1221, %v1162
      %1236 = vst.msk [vmem:[#allocation2 + $0x68] sm:$0x3f] %vm1223, %v1164
      %1237 = vst.msk [vmem:[#allocation2 + $0x70] sm:$0xff] %vm1221, %v1166
      %1238 = vst.msk [vmem:[#allocation2 + $0x78] sm:$0x3f] %vm1223, %v1168
      %1239 = vst.msk [vmem:[#allocation2 + $0x80] sm:$0xff] %vm1221, %v1170
      %1240 = vst.msk [vmem:[#allocation2 + $0x88] sm:$0x3f] %vm1223, %v1172
      %1241 = vst.msk [vmem:[#allocation2 + $0x90] sm:$0xff] %vm1221, %v1174
      %1242 = vst.msk [vmem:[#allocation2 + $0x98] sm:$0x3f] %vm1223, %v1176
      %1243 = vst.msk [vmem:[#allocation2 + $0xa0] sm:$0xff] %vm1221, %v1178
      %1244 = vst.msk [vmem:[#allocation2 + $0xa8] sm:$0x3f] %vm1223, %v1180
      %1245 = vst.msk [vmem:[#allocation2 + $0xb0] sm:$0xff] %vm1221, %v1182
      %1246 = vst.msk [vmem:[#allocation2 + $0xb8] sm:$0x3f] %vm1223, %v1184
      %1247 = vst.msk [vmem:[#allocation2 + $0xc0] sm:$0xff] %vm1221, %v1186
      %1248 = vst.msk [vmem:[#allocation2 + $0xc8] sm:$0x3f] %vm1223, %v1188
      %1249 = vst.msk [vmem:[#allocation2 + $0xd0] sm:$0xff] %vm1221, %v1190
      %1250 = vst.msk [vmem:[#allocation2 + $0xd8] sm:$0x3f] %vm1223, %v1192
      %v1251 = vld [vmem:[%s1080 + $0x1] sm:$0xff]
      %v1252 = vld [vmem:[%s1080 + $0x9] sm:$0x3f]
      %v1253 = vld [vmem:[%s1080 + $0x11] sm:$0xff]
      %v1254 = vld [vmem:[%s1080 + $0x19] sm:$0x3f]
      %v1255 = vld [vmem:[%s1080 + $0x21] sm:$0xff]
      %v1256 = vld [vmem:[%s1080 + $0x29] sm:$0x3f]
      %v1257 = vld [vmem:[%s1080 + $0x31] sm:$0xff]
      %v1258 = vld [vmem:[%s1080 + $0x39] sm:$0x3f]
      %v1259 = vld [vmem:[%s1080 + $0x41] sm:$0xff]
      %v1260 = vld [vmem:[%s1080 + $0x49] sm:$0x3f]
      %v1261 = vld [vmem:[%s1080 + $0x51] sm:$0xff]
      %v1262 = vld [vmem:[%s1080 + $0x59] sm:$0x3f]
      %v1263 = vld [vmem:[%s1080 + $0x61] sm:$0xff]
      %v1264 = vld [vmem:[%s1080 + $0x69] sm:$0x3f]
      %v1265 = vld [vmem:[%s1080 + $0x71] sm:$0xff]
      %v1266 = vld [vmem:[%s1080 + $0x79] sm:$0x3f]
      %v1267 = vld [vmem:[%s1080 + $0x81] sm:$0xff]
      %v1268 = vld [vmem:[%s1080 + $0x89] sm:$0x3f]
      %v1269 = vld [vmem:[%s1080 + $0x91] sm:$0xff]
      %v1270 = vld [vmem:[%s1080 + $0x99] sm:$0x3f]
      %v1271 = vld [vmem:[%s1080 + $0xa1] sm:$0xff]
      %v1272 = vld [vmem:[%s1080 + $0xa9] sm:$0x3f]
      %v1273 = vld [vmem:[%s1080 + $0xb1] sm:$0xff]
      %v1274 = vld [vmem:[%s1080 + $0xb9] sm:$0x3f]
      %v1275 = vld [vmem:[%s1080 + $0xc1] sm:$0xff]
      %v1276 = vld [vmem:[%s1080 + $0xc9] sm:$0x3f]
      %v1277 = vld [vmem:[%s1080 + $0xd1] sm:$0xff]
      %v1278 = vld [vmem:[%s1080 + $0xd9] sm:$0x3f]
      %1307 = vrot.lane.b32.xlu0 %v1251, 21
      %v1308 = vpop.permute.xlu0 %1307
      %1309 = vrot.lane.b32.xlu0 %v1252, 21
      %v1310 = vpop.permute.xlu0 %1309
      %1311 = vrot.lane.b32.xlu0 %v1253, 21
      %v1312 = vpop.permute.xlu0 %1311
      %1313 = vrot.lane.b32.xlu0 %v1254, 21
      %v1314 = vpop.permute.xlu0 %1313
      %1315 = vrot.lane.b32.xlu0 %v1255, 21
      %v1316 = vpop.permute.xlu0 %1315
      %1317 = vrot.lane.b32.xlu0 %v1256, 21
      %v1318 = vpop.permute.xlu0 %1317
      %1319 = vrot.lane.b32.xlu0 %v1257, 21
      %v1320 = vpop.permute.xlu0 %1319
      %1321 = vrot.lane.b32.xlu0 %v1258, 21
      %v1322 = vpop.permute.xlu0 %1321
      %1323 = vrot.lane.b32.xlu0 %v1259, 21
      %v1324 = vpop.permute.xlu0 %1323
      %1325 = vrot.lane.b32.xlu0 %v1260, 21
      %v1326 = vpop.permute.xlu0 %1325
      %1327 = vrot.lane.b32.xlu0 %v1261, 21
      %v1328 = vpop.permute.xlu0 %1327
      %1329 = vrot.lane.b32.xlu0 %v1262, 21
      %v1330 = vpop.permute.xlu0 %1329
      %1331 = vrot.lane.b32.xlu0 %v1263, 21
      %v1332 = vpop.permute.xlu0 %1331
      %1333 = vrot.lane.b32.xlu0 %v1264, 21
      %v1334 = vpop.permute.xlu0 %1333
      %1335 = vrot.lane.b32.xlu0 %v1265, 21
      %v1336 = vpop.permute.xlu0 %1335
      %1337 = vrot.lane.b32.xlu0 %v1266, 21
      %v1338 = vpop.permute.xlu0 %1337
      %1339 = vrot.lane.b32.xlu0 %v1267, 21
      %v1340 = vpop.permute.xlu0 %1339
      %1341 = vrot.lane.b32.xlu0 %v1268, 21
      %v1342 = vpop.permute.xlu0 %1341
      %1343 = vrot.lane.b32.xlu0 %v1269, 21
      %v1344 = vpop.permute.xlu0 %1343
      %1345 = vrot.lane.b32.xlu0 %v1270, 21
      %v1346 = vpop.permute.xlu0 %1345
      %1347 = vrot.lane.b32.xlu0 %v1271, 21
      %v1348 = vpop.permute.xlu0 %1347
      %1349 = vrot.lane.b32.xlu0 %v1272, 21
      %v1350 = vpop.permute.xlu0 %1349
      %1351 = vrot.lane.b32.xlu0 %v1273, 21
      %v1352 = vpop.permute.xlu0 %1351
      %1353 = vrot.lane.b32.xlu0 %v1274, 21
      %v1354 = vpop.permute.xlu0 %1353
      %1355 = vrot.lane.b32.xlu0 %v1275, 21
      %v1356 = vpop.permute.xlu0 %1355
      %1357 = vrot.lane.b32.xlu0 %v1276, 21
      %v1358 = vpop.permute.xlu0 %1357
      %1359 = vrot.lane.b32.xlu0 %v1277, 21
      %v1360 = vpop.permute.xlu0 %1359
      %1361 = vrot.lane.b32.xlu0 %v1278, 21
      %v1362 = vpop.permute.xlu0 %1361
      %vm1391 = vcmask 195752
      %1392 = vst.msk [vmem:[#allocation2] sm:$0xff] %vm1391, %v1308
      %vm1393 = vcmask 193704
      %1394 = vst.msk [vmem:[#allocation2 + $0x8] sm:$0x3f] %vm1393, %v1310
      %1395 = vst.msk [vmem:[#allocation2 + $0x10] sm:$0xff] %vm1391, %v1312
      %1396 = vst.msk [vmem:[#allocation2 + $0x18] sm:$0x3f] %vm1393, %v1314
      %1397 = vst.msk [vmem:[#allocation2 + $0x20] sm:$0xff] %vm1391, %v1316
      %1398 = vst.msk [vmem:[#allocation2 + $0x28] sm:$0x3f] %vm1393, %v1318
      %1399 = vst.msk [vmem:[#allocation2 + $0x30] sm:$0xff] %vm1391, %v1320
      %1400 = vst.msk [vmem:[#allocation2 + $0x38] sm:$0x3f] %vm1393, %v1322
      %1401 = vst.msk [vmem:[#allocation2 + $0x40] sm:$0xff] %vm1391, %v1324
      %1402 = vst.msk [vmem:[#allocation2 + $0x48] sm:$0x3f] %vm1393, %v1326
      %1403 = vst.msk [vmem:[#allocation2 + $0x50] sm:$0xff] %vm1391, %v1328
      %1404 = vst.msk [vmem:[#allocation2 + $0x58] sm:$0x3f] %vm1393, %v1330
      %1405 = vst.msk [vmem:[#allocation2 + $0x60] sm:$0xff] %vm1391, %v1332
      %1406 = vst.msk [vmem:[#allocation2 + $0x68] sm:$0x3f] %vm1393, %v1334
      %1407 = vst.msk [vmem:[#allocation2 + $0x70] sm:$0xff] %vm1391, %v1336
      %1408 = vst.msk [vmem:[#allocation2 + $0x78] sm:$0x3f] %vm1393, %v1338
      %1409 = vst.msk [vmem:[#allocation2 + $0x80] sm:$0xff] %vm1391, %v1340
      %1410 = vst.msk [vmem:[#allocation2 + $0x88] sm:$0x3f] %vm1393, %v1342
      %1411 = vst.msk [vmem:[#allocation2 + $0x90] sm:$0xff] %vm1391, %v1344
      %1412 = vst.msk [vmem:[#allocation2 + $0x98] sm:$0x3f] %vm1393, %v1346
      %1413 = vst.msk [vmem:[#allocation2 + $0xa0] sm:$0xff] %vm1391, %v1348
      %1414 = vst.msk [vmem:[#allocation2 + $0xa8] sm:$0x3f] %vm1393, %v1350
      %1415 = vst.msk [vmem:[#allocation2 + $0xb0] sm:$0xff] %vm1391, %v1352
      %1416 = vst.msk [vmem:[#allocation2 + $0xb8] sm:$0x3f] %vm1393, %v1354
      %1417 = vst.msk [vmem:[#allocation2 + $0xc0] sm:$0xff] %vm1391, %v1356
      %1418 = vst.msk [vmem:[#allocation2 + $0xc8] sm:$0x3f] %vm1393, %v1358
      %1419 = vst.msk [vmem:[#allocation2 + $0xd0] sm:$0xff] %vm1391, %v1360
      %1420 = vst.msk [vmem:[#allocation2 + $0xd8] sm:$0x3f] %vm1393, %v1362
      %v1421 = vld [vmem:[%s1080 + $0x2] sm:$0xff]
      %v1422 = vld [vmem:[%s1080 + $0xa] sm:$0x3f]
      %v1423 = vld [vmem:[%s1080 + $0x12] sm:$0xff]
      %v1424 = vld [vmem:[%s1080 + $0x1a] sm:$0x3f]
      %v1425 = vld [vmem:[%s1080 + $0x22] sm:$0xff]
      %v1426 = vld [vmem:[%s1080 + $0x2a] sm:$0x3f]
      %v1427 = vld [vmem:[%s1080 + $0x32] sm:$0xff]
      %v1428 = vld [vmem:[%s1080 + $0x3a] sm:$0x3f]
      %v1429 = vld [vmem:[%s1080 + $0x42] sm:$0xff]
      %v1430 = vld [vmem:[%s1080 + $0x4a] sm:$0x3f]
      %v1431 = vld [vmem:[%s1080 + $0x52] sm:$0xff]
      %v1432 = vld [vmem:[%s1080 + $0x5a] sm:$0x3f]
      %v1433 = vld [vmem:[%s1080 + $0x62] sm:$0xff]
      %v1434 = vld [vmem:[%s1080 + $0x6a] sm:$0x3f]
      %v1435 = vld [vmem:[%s1080 + $0x72] sm:$0xff]
      %v1436 = vld [vmem:[%s1080 + $0x7a] sm:$0x3f]
      %v1437 = vld [vmem:[%s1080 + $0x82] sm:$0xff]
      %v1438 = vld [vmem:[%s1080 + $0x8a] sm:$0x3f]
      %v1439 = vld [vmem:[%s1080 + $0x92] sm:$0xff]
      %v1440 = vld [vmem:[%s1080 + $0x9a] sm:$0x3f]
      %v1441 = vld [vmem:[%s1080 + $0xa2] sm:$0xff]
      %v1442 = vld [vmem:[%s1080 + $0xaa] sm:$0x3f]
      %v1443 = vld [vmem:[%s1080 + $0xb2] sm:$0xff]
      %v1444 = vld [vmem:[%s1080 + $0xba] sm:$0x3f]
      %v1445 = vld [vmem:[%s1080 + $0xc2] sm:$0xff]
      %v1446 = vld [vmem:[%s1080 + $0xca] sm:$0x3f]
      %v1447 = vld [vmem:[%s1080 + $0xd2] sm:$0xff]
      %v1448 = vld [vmem:[%s1080 + $0xda] sm:$0x3f]
      %1477 = vrot.lane.b32.xlu0 %v1421, 24
      %v1478 = vpop.permute.xlu0 %1477
      %1479 = vrot.lane.b32.xlu0 %v1422, 24
      %v1480 = vpop.permute.xlu0 %1479
      %1481 = vrot.lane.b32.xlu0 %v1423, 24
      %v1482 = vpop.permute.xlu0 %1481
      %1483 = vrot.lane.b32.xlu0 %v1424, 24
      %v1484 = vpop.permute.xlu0 %1483
      %1485 = vrot.lane.b32.xlu0 %v1425, 24
      %v1486 = vpop.permute.xlu0 %1485
      %1487 = vrot.lane.b32.xlu0 %v1426, 24
      %v1488 = vpop.permute.xlu0 %1487
      %1489 = vrot.lane.b32.xlu0 %v1427, 24
      %v1490 = vpop.permute.xlu0 %1489
      %1491 = vrot.lane.b32.xlu0 %v1428, 24
      %v1492 = vpop.permute.xlu0 %1491
      %1493 = vrot.lane.b32.xlu0 %v1429, 24
      %v1494 = vpop.permute.xlu0 %1493
      %1495 = vrot.lane.b32.xlu0 %v1430, 24
      %v1496 = vpop.permute.xlu0 %1495
      %1497 = vrot.lane.b32.xlu0 %v1431, 24
      %v1498 = vpop.permute.xlu0 %1497
      %1499 = vrot.lane.b32.xlu0 %v1432, 24
      %v1500 = vpop.permute.xlu0 %1499
      %1501 = vrot.lane.b32.xlu0 %v1433, 24
      %v1502 = vpop.permute.xlu0 %1501
      %1503 = vrot.lane.b32.xlu0 %v1434, 24
      %v1504 = vpop.permute.xlu0 %1503
      %1505 = vrot.lane.b32.xlu0 %v1435, 24
      %v1506 = vpop.permute.xlu0 %1505
      %1507 = vrot.lane.b32.xlu0 %v1436, 24
      %v1508 = vpop.permute.xlu0 %1507
      %1509 = vrot.lane.b32.xlu0 %v1437, 24
      %v1510 = vpop.permute.xlu0 %1509
      %1511 = vrot.lane.b32.xlu0 %v1438, 24
      %v1512 = vpop.permute.xlu0 %1511
      %1513 = vrot.lane.b32.xlu0 %v1439, 24
      %v1514 = vpop.permute.xlu0 %1513
      %1515 = vrot.lane.b32.xlu0 %v1440, 24
      %v1516 = vpop.permute.xlu0 %1515
      %1517 = vrot.lane.b32.xlu0 %v1441, 24
      %v1518 = vpop.permute.xlu0 %1517
      %1519 = vrot.lane.b32.xlu0 %v1442, 24
      %v1520 = vpop.permute.xlu0 %1519
      %1521 = vrot.lane.b32.xlu0 %v1443, 24
      %v1522 = vpop.permute.xlu0 %1521
      %1523 = vrot.lane.b32.xlu0 %v1444, 24
      %v1524 = vpop.permute.xlu0 %1523
      %1525 = vrot.lane.b32.xlu0 %v1445, 24
      %v1526 = vpop.permute.xlu0 %1525
      %1527 = vrot.lane.b32.xlu0 %v1446, 24
      %v1528 = vpop.permute.xlu0 %1527
      %1529 = vrot.lane.b32.xlu0 %v1447, 24
      %v1530 = vpop.permute.xlu0 %1529
      %1531 = vrot.lane.b32.xlu0 %v1448, 24
      %v1532 = vpop.permute.xlu0 %1531
      %vm1561 = vcmask 220352
      %1562 = vst.msk [vmem:[#allocation2] sm:$0xff] %vm1561, %v1478
      %vm1563 = vcmask 218304
      %1564 = vst.msk [vmem:[#allocation2 + $0x8] sm:$0x3f] %vm1563, %v1480
      %1565 = vst.msk [vmem:[#allocation2 + $0x10] sm:$0xff] %vm1561, %v1482
      %1566 = vst.msk [vmem:[#allocation2 + $0x18] sm:$0x3f] %vm1563, %v1484
      %1567 = vst.msk [vmem:[#allocation2 + $0x20] sm:$0xff] %vm1561, %v1486
      %1568 = vst.msk [vmem:[#allocation2 + $0x28] sm:$0x3f] %vm1563, %v1488
      %1569 = vst.msk [vmem:[#allocation2 + $0x30] sm:$0xff] %vm1561, %v1490
      %1570 = vst.msk [vmem:[#allocation2 + $0x38] sm:$0x3f] %vm1563, %v1492
      %1571 = vst.msk [vmem:[#allocation2 + $0x40] sm:$0xff] %vm1561, %v1494
      %1572 = vst.msk [vmem:[#allocation2 + $0x48] sm:$0x3f] %vm1563, %v1496
      %1573 = vst.msk [vmem:[#allocation2 + $0x50] sm:$0xff] %vm1561, %v1498
      %1574 = vst.msk [vmem:[#allocation2 + $0x58] sm:$0x3f] %vm1563, %v1500
      %1575 = vst.msk [vmem:[#allocation2 + $0x60] sm:$0xff] %vm1561, %v1502
      %1576 = vst.msk [vmem:[#allocation2 + $0x68] sm:$0x3f] %vm1563, %v1504
      %1577 = vst.msk [vmem:[#allocation2 + $0x70] sm:$0xff] %vm1561, %v1506
      %1578 = vst.msk [vmem:[#allocation2 + $0x78] sm:$0x3f] %vm1563, %v1508
      %1579 = vst.msk [vmem:[#allocation2 + $0x80] sm:$0xff] %vm1561, %v1510
      %1580 = vst.msk [vmem:[#allocation2 + $0x88] sm:$0x3f] %vm1563, %v1512
      %1581 = vst.msk [vmem:[#allocation2 + $0x90] sm:$0xff] %vm1561, %v1514
      %1582 = vst.msk [vmem:[#allocation2 + $0x98] sm:$0x3f] %vm1563, %v1516
      %1583 = vst.msk [vmem:[#allocation2 + $0xa0] sm:$0xff] %vm1561, %v1518
      %1584 = vst.msk [vmem:[#allocation2 + $0xa8] sm:$0x3f] %vm1563, %v1520
      %1585 = vst.msk [vmem:[#allocation2 + $0xb0] sm:$0xff] %vm1561, %v1522
      %1586 = vst.msk [vmem:[#allocation2 + $0xb8] sm:$0x3f] %vm1563, %v1524
      %1587 = vst.msk [vmem:[#allocation2 + $0xc0] sm:$0xff] %vm1561, %v1526
      %1588 = vst.msk [vmem:[#allocation2 + $0xc8] sm:$0x3f] %vm1563, %v1528
      %1589 = vst.msk [vmem:[#allocation2 + $0xd0] sm:$0xff] %vm1561, %v1530
      %1590 = vst.msk [vmem:[#allocation2 + $0xd8] sm:$0x3f] %vm1563, %v1532
      %v1591 = vld [vmem:[#allocation2] sm:$0xff]
      %v1592 = vld [vmem:[#allocation2 + $0x8] sm:$0x3f]
      %v1593 = vld [vmem:[#allocation2 + $0x10] sm:$0xff]
      %v1594 = vld [vmem:[#allocation2 + $0x18] sm:$0x3f]
      %v1595 = vld [vmem:[#allocation2 + $0x20] sm:$0xff]
      %v1596 = vld [vmem:[#allocation2 + $0x28] sm:$0x3f]
      %v1597 = vld [vmem:[#allocation2 + $0x30] sm:$0xff]
      %v1598 = vld [vmem:[#allocation2 + $0x38] sm:$0x3f]
      %v1599 = vld [vmem:[#allocation2 + $0x40] sm:$0xff]
      %v1600 = vld [vmem:[#allocation2 + $0x48] sm:$0x3f]
      %v1601 = vld [vmem:[#allocation2 + $0x50] sm:$0xff]
      %v1602 = vld [vmem:[#allocation2 + $0x58] sm:$0x3f]
      %v1603 = vld [vmem:[#allocation2 + $0x60] sm:$0xff]
      %v1604 = vld [vmem:[#allocation2 + $0x68] sm:$0x3f]
      %v1605 = vld [vmem:[#allocation2 + $0x70] sm:$0xff]
      %v1606 = vld [vmem:[#allocation2 + $0x78] sm:$0x3f]
      %v1607 = vld [vmem:[#allocation2 + $0x80] sm:$0xff]
      %v1608 = vld [vmem:[#allocation2 + $0x88] sm:$0x3f]
      %v1609 = vld [vmem:[#allocation2 + $0x90] sm:$0xff]
      %v1610 = vld [vmem:[#allocation2 + $0x98] sm:$0x3f]
      %v1611 = vld [vmem:[#allocation2 + $0xa0] sm:$0xff]
      %v1612 = vld [vmem:[#allocation2 + $0xa8] sm:$0x3f]
      %v1613 = vld [vmem:[#allocation2 + $0xb0] sm:$0xff]
      %v1614 = vld [vmem:[#allocation2 + $0xb8] sm:$0x3f]
      %v1615 = vld [vmem:[#allocation2 + $0xc0] sm:$0xff]
      %v1616 = vld [vmem:[#allocation2 + $0xc8] sm:$0x3f]
      %v1617 = vld [vmem:[#allocation2 + $0xd0] sm:$0xff]
      %v1618 = vld [vmem:[#allocation2 + $0xd8] sm:$0x3f]
      %v1647 = vcombine.high %v1591, %v1591
      %v1649 = vunpack.c.l.s4 1983009808
      %v1650 = vunpack.c.0.s8 %v1649
      %v1651 = vlaneseq
      %v1652 = vshrl.u32 %v1651, 7
      %v1653 = vsub.s32 %v1650, %v1652
      %v1654 = vrot.slane %v1591, %v1653
      %v1656 = vunpack.c.l.s4 1983009808
      %v1657 = vunpack.c.0.s8 %v1656
      %v1658 = vlaneseq
      %v1659 = vshrl.u32 %v1658, 7
      %v1660 = vsub.s32 %v1657, %v1659
      %v1661 = vrot.slane %v1647, %v1660
      %v1662 = vcombine.high %v1654, %v1654
      %v1663 = vcombine.high %v1661, %v1661
      %v1664 = vcombine.high %v1592, %v1592
      %v1666 = vunpack.c.l.s4 1983009808
      %v1667 = vunpack.c.0.s8 %v1666
      %v1668 = vlaneseq
      %v1669 = vshrl.u32 %v1668, 7
      %v1670 = vsub.s32 %v1667, %v1669
      %v1671 = vrot.slane %v1592, %v1670
      %v1673 = vunpack.c.l.s4 1983009808
      %v1674 = vunpack.c.0.s8 %v1673
      %v1675 = vlaneseq
      %v1676 = vshrl.u32 %v1675, 7
      %v1677 = vsub.s32 %v1674, %v1676
      %v1678 = vrot.slane %v1664, %v1677
      %v1679 = vcombine.high %v1671, %v1671
      %v1680 = vcombine.high %v1593, %v1593
      %v1682 = vunpack.c.l.s4 1983009808
      %v1683 = vunpack.c.0.s8 %v1682
      %v1684 = vlaneseq
      %v1685 = vshrl.u32 %v1684, 7
      %v1686 = vsub.s32 %v1683, %v1685
      %v1687 = vrot.slane %v1593, %v1686
      %v1689 = vunpack.c.l.s4 1983009808
      %v1690 = vunpack.c.0.s8 %v1689
      %v1691 = vlaneseq
      %v1692 = vshrl.u32 %v1691, 7
      %v1693 = vsub.s32 %v1690, %v1692
      %v1694 = vrot.slane %v1680, %v1693
      %v1695 = vcombine.high %v1687, %v1687
      %v1696 = vcombine.high %v1694, %v1694
      %v1697 = vcombine.high %v1594, %v1594
      %v1699 = vunpack.c.l.s4 1983009808
      %v1700 = vunpack.c.0.s8 %v1699
      %v1701 = vlaneseq
      %v1702 = vshrl.u32 %v1701, 7
      %v1703 = vsub.s32 %v1700, %v1702
      %v1704 = vrot.slane %v1594, %v1703
      %v1706 = vunpack.c.l.s4 1983009808
      %v1707 = vunpack.c.0.s8 %v1706
      %v1708 = vlaneseq
      %v1709 = vshrl.u32 %v1708, 7
      %v1710 = vsub.s32 %v1707, %v1709
      %v1711 = vrot.slane %v1697, %v1710
      %v1712 = vcombine.high %v1704, %v1704
      %v1713 = vcombine.high %v1595, %v1595
      %v1715 = vunpack.c.l.s4 1983009808
      %v1716 = vunpack.c.0.s8 %v1715
      %v1717 = vlaneseq
      %v1718 = vshrl.u32 %v1717, 7
      %v1719 = vsub.s32 %v1716, %v1718
      %v1720 = vrot.slane %v1595, %v1719
      %v1722 = vunpack.c.l.s4 1983009808
      %v1723 = vunpack.c.0.s8 %v1722
      %v1724 = vlaneseq
      %v1725 = vshrl.u32 %v1724, 7
      %v1726 = vsub.s32 %v1723, %v1725
      %v1727 = vrot.slane %v1713, %v1726
      %v1728 = vcombine.high %v1720, %v1720
      %v1729 = vcombine.high %v1727, %v1727
      %v1730 = vcombine.high %v1596, %v1596
      %v1732 = vunpack.c.l.s4 1983009808
      %v1733 = vunpack.c.0.s8 %v1732
      %v1734 = vlaneseq
      %v1735 = vshrl.u32 %v1734, 7
      %v1736 = vsub.s32 %v1733, %v1735
      %v1737 = vrot.slane %v1596, %v1736
      %v1739 = vunpack.c.l.s4 1983009808
      %v1740 = vunpack.c.0.s8 %v1739
      %v1741 = vlaneseq
      %v1742 = vshrl.u32 %v1741, 7
      %v1743 = vsub.s32 %v1740, %v1742
      %v1744 = vrot.slane %v1730, %v1743
      %v1745 = vcombine.high %v1737, %v1737
      %v1746 = vcombine.high %v1597, %v1597
      %v1748 = vunpack.c.l.s4 1983009808
      %v1749 = vunpack.c.0.s8 %v1748
      %v1750 = vlaneseq
      %v1751 = vshrl.u32 %v1750, 7
      %v1752 = vsub.s32 %v1749, %v1751
      %v1753 = vrot.slane %v1597, %v1752
      %v1755 = vunpack.c.l.s4 1983009808
      %v1756 = vunpack.c.0.s8 %v1755
      %v1757 = vlaneseq
      %v1758 = vshrl.u32 %v1757, 7
      %v1759 = vsub.s32 %v1756, %v1758
      %v1760 = vrot.slane %v1746, %v1759
      %v1761 = vcombine.high %v1753, %v1753
      %v1762 = vcombine.high %v1760, %v1760
      %v1763 = vcombine.high %v1598, %v1598
      %v1765 = vunpack.c.l.s4 1983009808
      %v1766 = vunpack.c.0.s8 %v1765
      %v1767 = vlaneseq
      %v1768 = vshrl.u32 %v1767, 7
      %v1769 = vsub.s32 %v1766, %v1768
      %v1770 = vrot.slane %v1598, %v1769
      %v1772 = vunpack.c.l.s4 1983009808
      %v1773 = vunpack.c.0.s8 %v1772
      %v1774 = vlaneseq
      %v1775 = vshrl.u32 %v1774, 7
      %v1776 = vsub.s32 %v1773, %v1775
      %v1777 = vrot.slane %v1763, %v1776
      %v1778 = vcombine.high %v1770, %v1770
      %v1779 = vcombine.high %v1599, %v1599
      %v1781 = vunpack.c.l.s4 1983009808
      %v1782 = vunpack.c.0.s8 %v1781
      %v1783 = vlaneseq
      %v1784 = vshrl.u32 %v1783, 7
      %v1785 = vsub.s32 %v1782, %v1784
      %v1786 = vrot.slane %v1599, %v1785
      %v1788 = vunpack.c.l.s4 1983009808
      %v1789 = vunpack.c.0.s8 %v1788
      %v1790 = vlaneseq
      %v1791 = vshrl.u32 %v1790, 7
      %v1792 = vsub.s32 %v1789, %v1791
      %v1793 = vrot.slane %v1779, %v1792
      %v1794 = vcombine.high %v1786, %v1786
      %v1795 = vcombine.high %v1793, %v1793
      %v1796 = vcombine.high %v1600, %v1600
      %v1798 = vunpack.c.l.s4 1983009808
      %v1799 = vunpack.c.0.s8 %v1798
      %v1800 = vlaneseq
      %v1801 = vshrl.u32 %v1800, 7
      %v1802 = vsub.s32 %v1799, %v1801
      %v1803 = vrot.slane %v1600, %v1802
      %v1805 = vunpack.c.l.s4 1983009808
      %v1806 = vunpack.c.0.s8 %v1805
      %v1807 = vlaneseq
      %v1808 = vshrl.u32 %v1807, 7
      %v1809 = vsub.s32 %v1806, %v1808
      %v1810 = vrot.slane %v1796, %v1809
      %v1811 = vcombine.high %v1803, %v1803
      %v1812 = vcombine.high %v1601, %v1601
      %v1814 = vunpack.c.l.s4 1983009808
      %v1815 = vunpack.c.0.s8 %v1814
      %v1816 = vlaneseq
      %v1817 = vshrl.u32 %v1816, 7
      %v1818 = vsub.s32 %v1815, %v1817
      %v1819 = vrot.slane %v1601, %v1818
      %v1821 = vunpack.c.l.s4 1983009808
      %v1822 = vunpack.c.0.s8 %v1821
      %v1823 = vlaneseq
      %v1824 = vshrl.u32 %v1823, 7
      %v1825 = vsub.s32 %v1822, %v1824
      %v1826 = vrot.slane %v1812, %v1825
      %v1827 = vcombine.high %v1819, %v1819
      %v1828 = vcombine.high %v1826, %v1826
      %v1829 = vcombine.high %v1602, %v1602
      %v1831 = vunpack.c.l.s4 1983009808
      %v1832 = vunpack.c.0.s8 %v1831
      %v1833 = vlaneseq
      %v1834 = vshrl.u32 %v1833, 7
      %v1835 = vsub.s32 %v1832, %v1834
      %v1836 = vrot.slane %v1602, %v1835
      %v1838 = vunpack.c.l.s4 1983009808
      %v1839 = vunpack.c.0.s8 %v1838
      %v1840 = vlaneseq
      %v1841 = vshrl.u32 %v1840, 7
      %v1842 = vsub.s32 %v1839, %v1841
      %v1843 = vrot.slane %v1829, %v1842
      %v1844 = vcombine.high %v1836, %v1836
      %v1845 = vcombine.high %v1603, %v1603
      %v1847 = vunpack.c.l.s4 1983009808
      %v1848 = vunpack.c.0.s8 %v1847
      %v1849 = vlaneseq
      %v1850 = vshrl.u32 %v1849, 7
      %v1851 = vsub.s32 %v1848, %v1850
      %v1852 = vrot.slane %v1603, %v1851
      %v1854 = vunpack.c.l.s4 1983009808
      %v1855 = vunpack.c.0.s8 %v1854
      %v1856 = vlaneseq
      %v1857 = vshrl.u32 %v1856, 7
      %v1858 = vsub.s32 %v1855, %v1857
      %v1859 = vrot.slane %v1845, %v1858
      %v1860 = vcombine.high %v1852, %v1852
      %v1861 = vcombine.high %v1859, %v1859
      %v1862 = vcombine.high %v1604, %v1604
      %v1864 = vunpack.c.l.s4 1983009808
      %v1865 = vunpack.c.0.s8 %v1864
      %v1866 = vlaneseq
      %v1867 = vshrl.u32 %v1866, 7
      %v1868 = vsub.s32 %v1865, %v1867
      %v1869 = vrot.slane %v1604, %v1868
      %v1871 = vunpack.c.l.s4 1983009808
      %v1872 = vunpack.c.0.s8 %v1871
      %v1873 = vlaneseq
      %v1874 = vshrl.u32 %v1873, 7
      %v1875 = vsub.s32 %v1872, %v1874
      %v1876 = vrot.slane %v1862, %v1875
      %v1877 = vcombine.high %v1869, %v1869
      %v1878 = vcombine.high %v1605, %v1605
      %v1880 = vunpack.c.l.s4 1983009808
      %v1881 = vunpack.c.0.s8 %v1880
      %v1882 = vlaneseq
      %v1883 = vshrl.u32 %v1882, 7
      %v1884 = vsub.s32 %v1881, %v1883
      %v1885 = vrot.slane %v1605, %v1884
      %v1887 = vunpack.c.l.s4 1983009808
      %v1888 = vunpack.c.0.s8 %v1887
      %v1889 = vlaneseq
      %v1890 = vshrl.u32 %v1889, 7
      %v1891 = vsub.s32 %v1888, %v1890
      %v1892 = vrot.slane %v1878, %v1891
      %v1893 = vcombine.high %v1885, %v1885
      %v1894 = vcombine.high %v1892, %v1892
      %v1895 = vcombine.high %v1606, %v1606
      %v1897 = vunpack.c.l.s4 1983009808
      %v1898 = vunpack.c.0.s8 %v1897
      %v1899 = vlaneseq
      %v1900 = vshrl.u32 %v1899, 7
      %v1901 = vsub.s32 %v1898, %v1900
      %v1902 = vrot.slane %v1606, %v1901
      %v1904 = vunpack.c.l.s4 1983009808
      %v1905 = vunpack.c.0.s8 %v1904
      %v1906 = vlaneseq
      %v1907 = vshrl.u32 %v1906, 7
      %v1908 = vsub.s32 %v1905, %v1907
      %v1909 = vrot.slane %v1895, %v1908
      %v1910 = vcombine.high %v1902, %v1902
      %v1911 = vcombine.high %v1607, %v1607
      %v1913 = vunpack.c.l.s4 1983009808
      %v1914 = vunpack.c.0.s8 %v1913
      %v1915 = vlaneseq
      %v1916 = vshrl.u32 %v1915, 7
      %v1917 = vsub.s32 %v1914, %v1916
      %v1918 = vrot.slane %v1607, %v1917
      %v1920 = vunpack.c.l.s4 1983009808
      %v1921 = vunpack.c.0.s8 %v1920
      %v1922 = vlaneseq
      %v1923 = vshrl.u32 %v1922, 7
      %v1924 = vsub.s32 %v1921, %v1923
      %v1925 = vrot.slane %v1911, %v1924
      %v1926 = vcombine.high %v1918, %v1918
      %v1927 = vcombine.high %v1925, %v1925
      %v1928 = vcombine.high %v1608, %v1608
      %v1930 = vunpack.c.l.s4 1983009808
      %v1931 = vunpack.c.0.s8 %v1930
      %v1932 = vlaneseq
      %v1933 = vshrl.u32 %v1932, 7
      %v1934 = vsub.s32 %v1931, %v1933
      %v1935 = vrot.slane %v1608, %v1934
      %v1937 = vunpack.c.l.s4 1983009808
      %v1938 = vunpack.c.0.s8 %v1937
      %v1939 = vlaneseq
      %v1940 = vshrl.u32 %v1939, 7
      %v1941 = vsub.s32 %v1938, %v1940
      %v1942 = vrot.slane %v1928, %v1941
      %v1943 = vcombine.high %v1935, %v1935
      %v1944 = vcombine.high %v1609, %v1609
      %v1946 = vunpack.c.l.s4 1983009808
      %v1947 = vunpack.c.0.s8 %v1946
      %v1948 = vlaneseq
      %v1949 = vshrl.u32 %v1948, 7
      %v1950 = vsub.s32 %v1947, %v1949
      %v1951 = vrot.slane %v1609, %v1950
      %v1953 = vunpack.c.l.s4 1983009808
      %v1954 = vunpack.c.0.s8 %v1953
      %v1955 = vlaneseq
      %v1956 = vshrl.u32 %v1955, 7
      %v1957 = vsub.s32 %v1954, %v1956
      %v1958 = vrot.slane %v1944, %v1957
      %v1959 = vcombine.high %v1951, %v1951
      %v1960 = vcombine.high %v1958, %v1958
      %v1961 = vcombine.high %v1610, %v1610
      %v1963 = vunpack.c.l.s4 1983009808
      %v1964 = vunpack.c.0.s8 %v1963
      %v1965 = vlaneseq
      %v1966 = vshrl.u32 %v1965, 7
      %v1967 = vsub.s32 %v1964, %v1966
      %v1968 = vrot.slane %v1610, %v1967
      %v1970 = vunpack.c.l.s4 1983009808
      %v1971 = vunpack.c.0.s8 %v1970
      %v1972 = vlaneseq
      %v1973 = vshrl.u32 %v1972, 7
      %v1974 = vsub.s32 %v1971, %v1973
      %v1975 = vrot.slane %v1961, %v1974
      %v1976 = vcombine.high %v1968, %v1968
      %v1977 = vcombine.high %v1611, %v1611
      %v1979 = vunpack.c.l.s4 1983009808
      %v1980 = vunpack.c.0.s8 %v1979
      %v1981 = vlaneseq
      %v1982 = vshrl.u32 %v1981, 7
      %v1983 = vsub.s32 %v1980, %v1982
      %v1984 = vrot.slane %v1611, %v1983
      %v1986 = vunpack.c.l.s4 1983009808
      %v1987 = vunpack.c.0.s8 %v1986
      %v1988 = vlaneseq
      %v1989 = vshrl.u32 %v1988, 7
      %v1990 = vsub.s32 %v1987, %v1989
      %v1991 = vrot.slane %v1977, %v1990
      %v1992 = vcombine.high %v1984, %v1984
      %v1993 = vcombine.high %v1991, %v1991
      %v1994 = vcombine.high %v1612, %v1612
      %v1996 = vunpack.c.l.s4 1983009808
      %v1997 = vunpack.c.0.s8 %v1996
      %v1998 = vlaneseq
      %v1999 = vshrl.u32 %v1998, 7
      %v2000 = vsub.s32 %v1997, %v1999
      %v2001 = vrot.slane %v1612, %v2000
      %v2003 = vunpack.c.l.s4 1983009808
      %v2004 = vunpack.c.0.s8 %v2003
      %v2005 = vlaneseq
      %v2006 = vshrl.u32 %v2005, 7
      %v2007 = vsub.s32 %v2004, %v2006
      %v2008 = vrot.slane %v1994, %v2007
      %v2009 = vcombine.high %v2001, %v2001
      %v2010 = vcombine.high %v1613, %v1613
      %v2012 = vunpack.c.l.s4 1983009808
      %v2013 = vunpack.c.0.s8 %v2012
      %v2014 = vlaneseq
      %v2015 = vshrl.u32 %v2014, 7
      %v2016 = vsub.s32 %v2013, %v2015
      %v2017 = vrot.slane %v1613, %v2016
      %v2019 = vunpack.c.l.s4 1983009808
      %v2020 = vunpack.c.0.s8 %v2019
      %v2021 = vlaneseq
      %v2022 = vshrl.u32 %v2021, 7
      %v2023 = vsub.s32 %v2020, %v2022
      %v2024 = vrot.slane %v2010, %v2023
      %v2025 = vcombine.high %v2017, %v2017
      %v2026 = vcombine.high %v2024, %v2024
      %v2027 = vcombine.high %v1614, %v1614
      %v2029 = vunpack.c.l.s4 1983009808
      %v2030 = vunpack.c.0.s8 %v2029
      %v2031 = vlaneseq
      %v2032 = vshrl.u32 %v2031, 7
      %v2033 = vsub.s32 %v2030, %v2032
      %v2034 = vrot.slane %v1614, %v2033
      %v2036 = vunpack.c.l.s4 1983009808
      %v2037 = vunpack.c.0.s8 %v2036
      %v2038 = vlaneseq
      %v2039 = vshrl.u32 %v2038, 7
      %v2040 = vsub.s32 %v2037, %v2039
      %v2041 = vrot.slane %v2027, %v2040
      %v2042 = vcombine.high %v2034, %v2034
      %v2043 = vcombine.high %v1615, %v1615
      %v2045 = vunpack.c.l.s4 1983009808
      %v2046 = vunpack.c.0.s8 %v2045
      %v2047 = vlaneseq
      %v2048 = vshrl.u32 %v2047, 7
      %v2049 = vsub.s32 %v2046, %v2048
      %v2050 = vrot.slane %v1615, %v2049
      %v2052 = vunpack.c.l.s4 1983009808
      %v2053 = vunpack.c.0.s8 %v2052
      %v2054 = vlaneseq
      %v2055 = vshrl.u32 %v2054, 7
      %v2056 = vsub.s32 %v2053, %v2055
      %v2057 = vrot.slane %v2043, %v2056
      %v2058 = vcombine.high %v2050, %v2050
      %v2059 = vcombine.high %v2057, %v2057
      %v2060 = vcombine.high %v1616, %v1616
      %v2062 = vunpack.c.l.s4 1983009808
      %v2063 = vunpack.c.0.s8 %v2062
      %v2064 = vlaneseq
      %v2065 = vshrl.u32 %v2064, 7
      %v2066 = vsub.s32 %v2063, %v2065
      %v2067 = vrot.slane %v1616, %v2066
      %v2069 = vunpack.c.l.s4 1983009808
      %v2070 = vunpack.c.0.s8 %v2069
      %v2071 = vlaneseq
      %v2072 = vshrl.u32 %v2071, 7
      %v2073 = vsub.s32 %v2070, %v2072
      %v2074 = vrot.slane %v2060, %v2073
      %v2075 = vcombine.high %v2067, %v2067
      %v2076 = vcombine.high %v1617, %v1617
      %v2078 = vunpack.c.l.s4 1983009808
      %v2079 = vunpack.c.0.s8 %v2078
      %v2080 = vlaneseq
      %v2081 = vshrl.u32 %v2080, 7
      %v2082 = vsub.s32 %v2079, %v2081
      %v2083 = vrot.slane %v1617, %v2082
      %v2085 = vunpack.c.l.s4 1983009808
      %v2086 = vunpack.c.0.s8 %v2085
      %v2087 = vlaneseq
      %v2088 = vshrl.u32 %v2087, 7
      %v2089 = vsub.s32 %v2086, %v2088
      %v2090 = vrot.slane %v2076, %v2089
      %v2091 = vcombine.high %v2083, %v2083
      %v2092 = vcombine.high %v2090, %v2090
      %v2093 = vcombine.high %v1618, %v1618
      %v2095 = vunpack.c.l.s4 1983009808
      %v2096 = vunpack.c.0.s8 %v2095
      %v2097 = vlaneseq
      %v2098 = vshrl.u32 %v2097, 7
      %v2099 = vsub.s32 %v2096, %v2098
      %v2100 = vrot.slane %v1618, %v2099
      %v2102 = vunpack.c.l.s4 1983009808
      %v2103 = vunpack.c.0.s8 %v2102
      %v2104 = vlaneseq
      %v2105 = vshrl.u32 %v2104, 7
      %v2106 = vsub.s32 %v2103, %v2105
      %v2107 = vrot.slane %v2093, %v2106
      %v2108 = vcombine.high %v2100, %v2100
      %v2109 = vld [vmem:[%s1] sm:$0xff]
      %v2110 = vld [vmem:[%s1 + $0x8] sm:$0xff]
      %v2111 = vld [vmem:[%s1 + $0x10] sm:$0xff]
      %v2112 = vld [vmem:[%s1 + $0x18] sm:$0x7]
      %v2113 = vld [vmem:[%s2] sm:$0x1]
      %v2115 = vlaneseq
      %v2116 = vshrl.u32 %v2115, 7
      %v2117 = vsub.s32 0, %v2116
      %v2118 = vrot.slane %v2113, %v2117
      %v2120 = vcombine.low %v1654, %v1662
      %v2121 = vcombine.low %v1661, %v1663
      %v2123 = vunpack.c.l.s4 1983009808
      %v2124 = vunpack.c.0.s8 %v2123
      %v2125 = vlaneseq
      %v2126 = vshrl.u32 %v2125, 7
      %v2127 = vsub.s32 %v2124, %v2126
      %v2128 = vrot.slane %v2120, %v2127
      %v2130 = vunpack.c.l.s4 1983009808
      %v2131 = vunpack.c.0.s8 %v2130
      %v2132 = vlaneseq
      %v2133 = vshrl.u32 %v2132, 7
      %v2134 = vsub.s32 %v2131, %v2133
      %v2135 = vrot.slane %v2121, %v2134
      %v2136 = vcombine.low %v2128, %v2135
      %v2137 = vcombine.low %v1671, %v1679
      %v2138 = vcombine.low %v1678, %v1687
      %v2140 = vunpack.c.l.s4 1983009808
      %v2141 = vunpack.c.0.s8 %v2140
      %v2142 = vlaneseq
      %v2143 = vshrl.u32 %v2142, 7
      %v2144 = vsub.s32 %v2141, %v2143
      %v2145 = vrot.slane %v2137, %v2144
      %v2147 = vunpack.c.l.s4 1983009808
      %v2148 = vunpack.c.0.s8 %v2147
      %v2149 = vlaneseq
      %v2150 = vshrl.u32 %v2149, 7
      %v2151 = vsub.s32 %v2148, %v2150
      %v2152 = vrot.slane %v2138, %v2151
      %v2153 = vcombine.low %v2145, %v2152
      %v2154 = vcombine.low %v1695, %v1694
      %v2155 = vcombine.low %v1696, %v1704
      %v2157 = vunpack.c.l.s4 1983009808
      %v2158 = vunpack.c.0.s8 %v2157
      %v2159 = vlaneseq
      %v2160 = vshrl.u32 %v2159, 7
      %v2161 = vsub.s32 %v2158, %v2160
      %v2162 = vrot.slane %v2154, %v2161
      %v2164 = vunpack.c.l.s4 1983009808
      %v2165 = vunpack.c.0.s8 %v2164
      %v2166 = vlaneseq
      %v2167 = vshrl.u32 %v2166, 7
      %v2168 = vsub.s32 %v2165, %v2167
      %v2169 = vrot.slane %v2155, %v2168
      %v2170 = vcombine.low %v2162, %v2169
      %v2171 = vcombine.low %v1712, %v1711
      %v2172 = vcombine.low %v1720, %v1728
      %v2174 = vunpack.c.l.s4 1983009808
      %v2175 = vunpack.c.0.s8 %v2174
      %v2176 = vlaneseq
      %v2177 = vshrl.u32 %v2176, 7
      %v2178 = vsub.s32 %v2175, %v2177
      %v2179 = vrot.slane %v2171, %v2178
      %v2181 = vunpack.c.l.s4 1983009808
      %v2182 = vunpack.c.0.s8 %v2181
      %v2183 = vlaneseq
      %v2184 = vshrl.u32 %v2183, 7
      %v2185 = vsub.s32 %v2182, %v2184
      %v2186 = vrot.slane %v2172, %v2185
      %v2187 = vcombine.low %v2179, %v2186
      %v2188 = vcombine.low %v1727, %v1729
      %v2189 = vcombine.low %v1737, %v1745
      %v2191 = vunpack.c.l.s4 1983009808
      %v2192 = vunpack.c.0.s8 %v2191
      %v2193 = vlaneseq
      %v2194 = vshrl.u32 %v2193, 7
      %v2195 = vsub.s32 %v2192, %v2194
      %v2196 = vrot.slane %v2188, %v2195
      %v2198 = vunpack.c.l.s4 1983009808
      %v2199 = vunpack.c.0.s8 %v2198
      %v2200 = vlaneseq
      %v2201 = vshrl.u32 %v2200, 7
      %v2202 = vsub.s32 %v2199, %v2201
      %v2203 = vrot.slane %v2189, %v2202
      %v2204 = vcombine.low %v2196, %v2203
      %v2205 = vcombine.low %v1744, %v1753
      %v2206 = vcombine.low %v1761, %v1760
      %v2208 = vunpack.c.l.s4 1983009808
      %v2209 = vunpack.c.0.s8 %v2208
      %v2210 = vlaneseq
      %v2211 = vshrl.u32 %v2210, 7
      %v2212 = vsub.s32 %v2209, %v2211
      %v2213 = vrot.slane %v2205, %v2212
      %v2215 = vunpack.c.l.s4 1983009808
      %v2216 = vunpack.c.0.s8 %v2215
      %v2217 = vlaneseq
      %v2218 = vshrl.u32 %v2217, 7
      %v2219 = vsub.s32 %v2216, %v2218
      %v2220 = vrot.slane %v2206, %v2219
      %v2221 = vcombine.low %v2213, %v2220
      %v2222 = vcombine.low %v1762, %v1770
      %v2223 = vcombine.low %v1778, %v1777
      %v2225 = vunpack.c.l.s4 1983009808
      %v2226 = vunpack.c.0.s8 %v2225
      %v2227 = vlaneseq
      %v2228 = vshrl.u32 %v2227, 7
      %v2229 = vsub.s32 %v2226, %v2228
      %v2230 = vrot.slane %v2222, %v2229
      %v2232 = vunpack.c.l.s4 1983009808
      %v2233 = vunpack.c.0.s8 %v2232
      %v2234 = vlaneseq
      %v2235 = vshrl.u32 %v2234, 7
      %v2236 = vsub.s32 %v2233, %v2235
      %v2237 = vrot.slane %v2223, %v2236
      %v2238 = vcombine.low %v2230, %v2237
      %v2239 = vcombine.low %v1786, %v1794
      %v2240 = vcombine.low %v1793, %v1795
      %v2242 = vunpack.c.l.s4 1983009808
      %v2243 = vunpack.c.0.s8 %v2242
      %v2244 = vlaneseq
      %v2245 = vshrl.u32 %v2244, 7
      %v2246 = vsub.s32 %v2243, %v2245
      %v2247 = vrot.slane %v2239, %v2246
      %v2249 = vunpack.c.l.s4 1983009808
      %v2250 = vunpack.c.0.s8 %v2249
      %v2251 = vlaneseq
      %v2252 = vshrl.u32 %v2251, 7
      %v2253 = vsub.s32 %v2250, %v2252
      %v2254 = vrot.slane %v2240, %v2253
      %v2255 = vcombine.low %v2247, %v2254
      %v2256 = vcombine.low %v1803, %v1811
      %v2257 = vcombine.low %v1810, %v1819
      %v2259 = vunpack.c.l.s4 1983009808
      %v2260 = vunpack.c.0.s8 %v2259
      %v2261 = vlaneseq
      %v2262 = vshrl.u32 %v2261, 7
      %v2263 = vsub.s32 %v2260, %v2262
      %v2264 = vrot.slane %v2256, %v2263
      %v2266 = vunpack.c.l.s4 1983009808
      %v2267 = vunpack.c.0.s8 %v2266
      %v2268 = vlaneseq
      %v2269 = vshrl.u32 %v2268, 7
      %v2270 = vsub.s32 %v2267, %v2269
      %v2271 = vrot.slane %v2257, %v2270
      %v2272 = vcombine.low %v2264, %v2271
      %v2273 = vcombine.low %v1827, %v1826
      %v2274 = vcombine.low %v1828, %v1836
      %v2276 = vunpack.c.l.s4 1983009808
      %v2277 = vunpack.c.0.s8 %v2276
      %v2278 = vlaneseq
      %v2279 = vshrl.u32 %v2278, 7
      %v2280 = vsub.s32 %v2277, %v2279
      %v2281 = vrot.slane %v2273, %v2280
      %v2283 = vunpack.c.l.s4 1983009808
      %v2284 = vunpack.c.0.s8 %v2283
      %v2285 = vlaneseq
      %v2286 = vshrl.u32 %v2285, 7
      %v2287 = vsub.s32 %v2284, %v2286
      %v2288 = vrot.slane %v2274, %v2287
      %v2289 = vcombine.low %v2281, %v2288
      %v2290 = vcombine.low %v1844, %v1843
      %v2291 = vcombine.low %v1852, %v1860
      %v2293 = vunpack.c.l.s4 1983009808
      %v2294 = vunpack.c.0.s8 %v2293
      %v2295 = vlaneseq
      %v2296 = vshrl.u32 %v2295, 7
      %v2297 = vsub.s32 %v2294, %v2296
      %v2298 = vrot.slane %v2290, %v2297
      %v2300 = vunpack.c.l.s4 1983009808
      %v2301 = vunpack.c.0.s8 %v2300
      %v2302 = vlaneseq
      %v2303 = vshrl.u32 %v2302, 7
      %v2304 = vsub.s32 %v2301, %v2303
      %v2305 = vrot.slane %v2291, %v2304
      %v2306 = vcombine.low %v2298, %v2305
      %v2307 = vcombine.low %v1859, %v1861
      %v2308 = vcombine.low %v1869, %v1877
      %v2310 = vunpack.c.l.s4 1983009808
      %v2311 = vunpack.c.0.s8 %v2310
      %v2312 = vlaneseq
      %v2313 = vshrl.u32 %v2312, 7
      %v2314 = vsub.s32 %v2311, %v2313
      %v2315 = vrot.slane %v2307, %v2314
      %v2317 = vunpack.c.l.s4 1983009808
      %v2318 = vunpack.c.0.s8 %v2317
      %v2319 = vlaneseq
      %v2320 = vshrl.u32 %v2319, 7
      %v2321 = vsub.s32 %v2318, %v2320
      %v2322 = vrot.slane %v2308, %v2321
      %v2323 = vcombine.low %v2315, %v2322
      %v2324 = vcombine.low %v1876, %v1885
      %v2325 = vcombine.low %v1893, %v1892
      %v2327 = vunpack.c.l.s4 1983009808
      %v2328 = vunpack.c.0.s8 %v2327
      %v2329 = vlaneseq
      %v2330 = vshrl.u32 %v2329, 7
      %v2331 = vsub.s32 %v2328, %v2330
      %v2332 = vrot.slane %v2324, %v2331
      %v2334 = vunpack.c.l.s4 1983009808
      %v2335 = vunpack.c.0.s8 %v2334
      %v2336 = vlaneseq
      %v2337 = vshrl.u32 %v2336, 7
      %v2338 = vsub.s32 %v2335, %v2337
      %v2339 = vrot.slane %v2325, %v2338
      %v2340 = vcombine.low %v2332, %v2339
      %v2341 = vcombine.low %v1894, %v1902
      %v2342 = vcombine.low %v1910, %v1909
      %v2344 = vunpack.c.l.s4 1983009808
      %v2345 = vunpack.c.0.s8 %v2344
      %v2346 = vlaneseq
      %v2347 = vshrl.u32 %v2346, 7
      %v2348 = vsub.s32 %v2345, %v2347
      %v2349 = vrot.slane %v2341, %v2348
      %v2351 = vunpack.c.l.s4 1983009808
      %v2352 = vunpack.c.0.s8 %v2351
      %v2353 = vlaneseq
      %v2354 = vshrl.u32 %v2353, 7
      %v2355 = vsub.s32 %v2352, %v2354
      %v2356 = vrot.slane %v2342, %v2355
      %v2357 = vcombine.low %v2349, %v2356
      %v2358 = vcombine.low %v1918, %v1926
      %v2359 = vcombine.low %v1925, %v1927
      %v2361 = vunpack.c.l.s4 1983009808
      %v2362 = vunpack.c.0.s8 %v2361
      %v2363 = vlaneseq
      %v2364 = vshrl.u32 %v2363, 7
      %v2365 = vsub.s32 %v2362, %v2364
      %v2366 = vrot.slane %v2358, %v2365
      %v2368 = vunpack.c.l.s4 1983009808
      %v2369 = vunpack.c.0.s8 %v2368
      %v2370 = vlaneseq
      %v2371 = vshrl.u32 %v2370, 7
      %v2372 = vsub.s32 %v2369, %v2371
      %v2373 = vrot.slane %v2359, %v2372
      %v2374 = vcombine.low %v2366, %v2373
      %v2375 = vcombine.low %v1935, %v1943
      %v2376 = vcombine.low %v1942, %v1951
      %v2378 = vunpack.c.l.s4 1983009808
      %v2379 = vunpack.c.0.s8 %v2378
      %v2380 = vlaneseq
      %v2381 = vshrl.u32 %v2380, 7
      %v2382 = vsub.s32 %v2379, %v2381
      %v2383 = vrot.slane %v2375, %v2382
      %v2385 = vunpack.c.l.s4 1983009808
      %v2386 = vunpack.c.0.s8 %v2385
      %v2387 = vlaneseq
      %v2388 = vshrl.u32 %v2387, 7
      %v2389 = vsub.s32 %v2386, %v2388
      %v2390 = vrot.slane %v2376, %v2389
      %v2391 = vcombine.low %v2383, %v2390
      %v2392 = vcombine.low %v1959, %v1958
      %v2393 = vcombine.low %v1960, %v1968
      %v2395 = vunpack.c.l.s4 1983009808
      %v2396 = vunpack.c.0.s8 %v2395
      %v2397 = vlaneseq
      %v2398 = vshrl.u32 %v2397, 7
      %v2399 = vsub.s32 %v2396, %v2398
      %v2400 = vrot.slane %v2392, %v2399
      %v2402 = vunpack.c.l.s4 1983009808
      %v2403 = vunpack.c.0.s8 %v2402
      %v2404 = vlaneseq
      %v2405 = vshrl.u32 %v2404, 7
      %v2406 = vsub.s32 %v2403, %v2405
      %v2407 = vrot.slane %v2393, %v2406
      %v2408 = vcombine.low %v2400, %v2407
      %v2409 = vcombine.low %v1976, %v1975
      %v2410 = vcombine.low %v1984, %v1992
      %v2412 = vunpack.c.l.s4 1983009808
      %v2413 = vunpack.c.0.s8 %v2412
      %v2414 = vlaneseq
      %v2415 = vshrl.u32 %v2414, 7
      %v2416 = vsub.s32 %v2413, %v2415
      %v2417 = vrot.slane %v2409, %v2416
      %v2419 = vunpack.c.l.s4 1983009808
      %v2420 = vunpack.c.0.s8 %v2419
      %v2421 = vlaneseq
      %v2422 = vshrl.u32 %v2421, 7
      %v2423 = vsub.s32 %v2420, %v2422
      %v2424 = vrot.slane %v2410, %v2423
      %v2425 = vcombine.low %v2417, %v2424
      %v2426 = vcombine.low %v1991, %v1993
      %v2427 = vcombine.low %v2001, %v2009
      %v2429 = vunpack.c.l.s4 1983009808
      %v2430 = vunpack.c.0.s8 %v2429
      %v2431 = vlaneseq
      %v2432 = vshrl.u32 %v2431, 7
      %v2433 = vsub.s32 %v2430, %v2432
      %v2434 = vrot.slane %v2426, %v2433
      %v2436 = vunpack.c.l.s4 1983009808
      %v2437 = vunpack.c.0.s8 %v2436
      %v2438 = vlaneseq
      %v2439 = vshrl.u32 %v2438, 7
      %v2440 = vsub.s32 %v2437, %v2439
      %v2441 = vrot.slane %v2427, %v2440
      %v2442 = vcombine.low %v2434, %v2441
      %v2443 = vcombine.low %v2008, %v2017
      %v2444 = vcombine.low %v2025, %v2024
      %v2446 = vunpack.c.l.s4 1983009808
      %v2447 = vunpack.c.0.s8 %v2446
      %v2448 = vlaneseq
      %v2449 = vshrl.u32 %v2448, 7
      %v2450 = vsub.s32 %v2447, %v2449
      %v2451 = vrot.slane %v2443, %v2450
      %v2453 = vunpack.c.l.s4 1983009808
      %v2454 = vunpack.c.0.s8 %v2453
      %v2455 = vlaneseq
      %v2456 = vshrl.u32 %v2455, 7
      %v2457 = vsub.s32 %v2454, %v2456
      %v2458 = vrot.slane %v2444, %v2457
      %v2459 = vcombine.low %v2451, %v2458
      %v2460 = vcombine.low %v2026, %v2034
      %v2461 = vcombine.low %v2042, %v2041
      %v2463 = vunpack.c.l.s4 1983009808
      %v2464 = vunpack.c.0.s8 %v2463
      %v2465 = vlaneseq
      %v2466 = vshrl.u32 %v2465, 7
      %v2467 = vsub.s32 %v2464, %v2466
      %v2468 = vrot.slane %v2460, %v2467
      %v2470 = vunpack.c.l.s4 1983009808
      %v2471 = vunpack.c.0.s8 %v2470
      %v2472 = vlaneseq
      %v2473 = vshrl.u32 %v2472, 7
      %v2474 = vsub.s32 %v2471, %v2473
      %v2475 = vrot.slane %v2461, %v2474
      %v2476 = vcombine.low %v2468, %v2475
      %v2477 = vcombine.low %v2050, %v2058
      %v2478 = vcombine.low %v2057, %v2059
      %v2480 = vunpack.c.l.s4 1983009808
      %v2481 = vunpack.c.0.s8 %v2480
      %v2482 = vlaneseq
      %v2483 = vshrl.u32 %v2482, 7
      %v2484 = vsub.s32 %v2481, %v2483
      %v2485 = vrot.slane %v2477, %v2484
      %v2487 = vunpack.c.l.s4 1983009808
      %v2488 = vunpack.c.0.s8 %v2487
      %v2489 = vlaneseq
      %v2490 = vshrl.u32 %v2489, 7
      %v2491 = vsub.s32 %v2488, %v2490
      %v2492 = vrot.slane %v2478, %v2491
      %v2493 = vcombine.low %v2485, %v2492
      %v2494 = vcombine.low %v2067, %v2075
      %v2495 = vcombine.low %v2074, %v2083
      %v2497 = vunpack.c.l.s4 1983009808
      %v2498 = vunpack.c.0.s8 %v2497
      %v2499 = vlaneseq
      %v2500 = vshrl.u32 %v2499, 7
      %v2501 = vsub.s32 %v2498, %v2500
      %v2502 = vrot.slane %v2494, %v2501
      %v2504 = vunpack.c.l.s4 1983009808
      %v2505 = vunpack.c.0.s8 %v2504
      %v2506 = vlaneseq
      %v2507 = vshrl.u32 %v2506, 7
      %v2508 = vsub.s32 %v2505, %v2507
      %v2509 = vrot.slane %v2495, %v2508
      %v2510 = vcombine.low %v2502, %v2509
      %v2511 = vcombine.low %v2091, %v2090
      %v2512 = vcombine.low %v2092, %v2100
      %v2514 = vunpack.c.l.s4 1983009808
      %v2515 = vunpack.c.0.s8 %v2514
      %v2516 = vlaneseq
      %v2517 = vshrl.u32 %v2516, 7
      %v2518 = vsub.s32 %v2515, %v2517
      %v2519 = vrot.slane %v2511, %v2518
      %v2521 = vunpack.c.l.s4 1983009808
      %v2522 = vunpack.c.0.s8 %v2521
      %v2523 = vlaneseq
      %v2524 = vshrl.u32 %v2523, 7
      %v2525 = vsub.s32 %v2522, %v2524
      %v2526 = vrot.slane %v2512, %v2525
      %v2527 = vcombine.low %v2519, %v2526
      %v2528 = vcombine.low %v2108, %v2107
      %v2530 = vunpack.c.l.s4 1983009808
      %v2531 = vunpack.c.0.s8 %v2530
      %v2532 = vlaneseq
      %v2533 = vshrl.u32 %v2532, 7
      %v2534 = vsub.s32 %v2531, %v2533
      %v2535 = vrot.slane %v2528, %v2534
      %vm2536 = vcmask 220160
      %v2537 = vsel %vm2536, %v2136, 0
      %v2539 = vsel %vm2536, %v2153, 0
      %v2541 = vsel %vm2536, %v2170, 0
      %v2543 = vsel %vm2536, %v2187, 0
      %v2545 = vsel %vm2536, %v2204, 0
      %v2547 = vsel %vm2536, %v2221, 0
      %v2549 = vsel %vm2536, %v2238, 0
      %v2551 = vsel %vm2536, %v2255, 0
      %v2553 = vsel %vm2536, %v2272, 0
      %v2555 = vsel %vm2536, %v2289, 0
      %v2557 = vsel %vm2536, %v2306, 0
      %v2559 = vsel %vm2536, %v2323, 0
      %v2561 = vsel %vm2536, %v2340, 0
      %v2563 = vsel %vm2536, %v2357, 0
      %v2565 = vsel %vm2536, %v2374, 0
      %v2567 = vsel %vm2536, %v2391, 0
      %v2569 = vsel %vm2536, %v2408, 0
      %v2571 = vsel %vm2536, %v2425, 0
      %v2573 = vsel %vm2536, %v2442, 0
      %v2575 = vsel %vm2536, %v2459, 0
      %v2577 = vsel %vm2536, %v2476, 0
      %v2579 = vsel %vm2536, %v2493, 0
      %v2581 = vsel %vm2536, %v2510, 0
      %v2583 = vsel %vm2536, %v2527, 0
      %v2585 = vsel %vm2536, %v2535, 0
      %vm2587 = vcmask 1042432
      %v2589 = vsel %vm2587, %v2112, 0
      %2591 = vmatprep.subr.mxu0 0.0
      %2592 = vmatpush1.msra.mxu0 %v2109
      %2593 = vmatprep.subr.mxu0 0.0
      %2594 = vmatpush1.msra.mxu0 %v2110
      %2595 = vmatprep.subr.mxu0 0.0
      %2596 = vmatpush1.msra.mxu0 %v2111
      %2597 = vmatprep.subr.mxu0 0.0
      %2598 = vmatpush1.msra.mxu0 %v2589
      %2599 = vmatprep.subr.mxu0 0.0
      %2600 = vmatpush1.msra.mxu0 0.0
      %2601 = vmatprep.subr.mxu0 0.0
      %2602 = vmatpush1.msra.mxu0 0.0
      %2603 = vmatprep.subr.mxu0 0.0
      %2604 = vmatpush1.msra.mxu0 0.0
      %2605 = vmatprep.subr.mxu0 0.0
      %2606 = vmatpush1.msra.mxu0 0.0
      %2607 = vmatprep.subr.mxu0 0.0
      %2608 = vmatpush1.msra.mxu0 0.0
      %2609 = vmatprep.subr.mxu0 0.0
      %2610 = vmatpush1.msra.mxu0 0.0
      %2611 = vmatprep.subr.mxu0 0.0
      %2612 = vmatpush1.msra.mxu0 0.0
      %2613 = vmatprep.subr.mxu0 0.0
      %2614 = vmatpush1.msra.mxu0 0.0
      %2615 = vmatprep.subr.mxu0 0.0
      %2616 = vmatpush1.msra.mxu0 0.0
      %2617 = vmatprep.subr.mxu0 0.0
      %2618 = vmatpush1.msra.mxu0 0.0
      %2619 = vmatprep.subr.mxu0 0.0
      %2620 = vmatpush1.msra.mxu0 0.0
      %2621 = vmatprep.subr.mxu0 0.0
      %2622 = vmatpush1.msra.mxu0 0.0
      %2623 = vmatprep.subr.mxu0 0.0
      %2624 = vmatpush1.msra.mxu0 0.0
      %2625 = vmatprep.subr.mxu0 0.0
      %2626 = vmatpush1.msra.mxu0 0.0
      %2627 = vmatprep.subr.mxu0 0.0
      %2628 = vmatpush1.msra.mxu0 0.0
      %2629 = vmatprep.subr.mxu0 0.0
      %2630 = vmatpush1.msra.mxu0 0.0
      %2631 = vmatprep.subr.mxu0 0.0
      %2632 = vmatpush1.msra.mxu0 0.0
      %2633 = vmatprep.subr.mxu0 0.0
      %2634 = vmatpush1.msra.mxu0 0.0
      %2635 = vmatprep.subr.mxu0 0.0
      %2636 = vmatpush1.msra.mxu0 0.0
      %2637 = vmatprep.subr.mxu0 0.0
      %2638 = vmatpush1.msra.mxu0 0.0
      %2639 = vmatprep.subr.mxu0 0.0
      %2640 = vmatpush1.msra.mxu0 0.0
      %2641 = vmatprep.subr.mxu0 0.0
      %2642 = vmatpush1.msra.mxu0 0.0
      %2643 = vmatprep.subr.mxu0 0.0
      %2644 = vmatpush1.msra.mxu0 0.0
      %2645 = vmatprep.subr.mxu0 0.0
      %2646 = vmatpush1.msra.mxu0 0.0
      %2647 = vmatprep.subr.mxu0 0.0
      %2648 = vmatpush1.msra.mxu0 0.0
      %2649 = vmatprep.subr.mxu0 0.0
      %2650 = vmatpush1.msra.mxu0 0.0
      %2651 = vmatprep.subr.mxu0 0.0
      %2652 = vmatpush1.msra.mxu0 0.0
      %2653 = vmatprep.subr.mxu0 0.0
      %2654 = vmatpush1.msra.mxu0 0.0
      %2655 = vmatprep.mubr.f32.mxu0 0.0
      %2656 = vmatmul.mubr.f32.gmra.mrb[0].mxu0 %v2537
      %v2657 = vpop.f32.mrb[0].mxu0
      %v2658 = vadd.f32 %v2118, %v2657
      %v2659 = vpop.f32.mrb[0].mxu0
      %2660 = vmatprep.mubr.f32.mxu0 0.0
      %2661 = vmatmul.mubr.f32.gmra.mrb[0].mxu0 %v2539
      %v2662 = vpop.f32.mrb[0].mxu0
      %v2663 = vadd.f32 %v2118, %v2662
      %v2664 = vpop.f32.mrb[0].mxu0
      %2665 = vmatprep.mubr.f32.mxu0 0.0
      %2666 = vmatmul.mubr.f32.gmra.mrb[0].mxu0 %v2541
      %v2667 = vpop.f32.mrb[0].mxu0
      %v2668 = vadd.f32 %v2118, %v2667
      %v2669 = vpop.f32.mrb[0].mxu0
      %2670 = vmatprep.mubr.f32.mxu0 0.0
      %2671 = vmatmul.mubr.f32.gmra.mrb[0].mxu0 %v2543
      %v2672 = vpop.f32.mrb[0].mxu0
      %v2673 = vadd.f32 %v2118, %v2672
      %v2674 = vpop.f32.mrb[0].mxu0
      %2675 = vmatprep.mubr.f32.mxu0 0.0
      %2676 = vmatmul.mubr.f32.gmra.mrb[0].mxu0 %v2545
      %v2677 = vpop.f32.mrb[0].mxu0
      %v2678 = vadd.f32 %v2118, %v2677
      %v2679 = vpop.f32.mrb[0].mxu0
      %2680 = vmatprep.mubr.f32.mxu0 0.0
      %2681 = vmatmul.mubr.f32.gmra.mrb[0].mxu0 %v2547
      %v2682 = vpop.f32.mrb[0].mxu0
      %v2683 = vadd.f32 %v2118, %v2682
      %v2684 = vpop.f32.mrb[0].mxu0
      %2685 = vmatprep.mubr.f32.mxu0 0.0
      %2686 = vmatmul.mubr.f32.gmra.mrb[0].mxu0 %v2549
      %v2687 = vpop.f32.mrb[0].mxu0
      %v2688 = vadd.f32 %v2118, %v2687
      %v2689 = vpop.f32.mrb[0].mxu0
      %2690 = vmatprep.mubr.f32.mxu0 0.0
      %2691 = vmatmul.mubr.f32.gmra.mrb[0].mxu0 %v2551
      %v2692 = vpop.f32.mrb[0].mxu0
      %v2693 = vadd.f32 %v2118, %v2692
      %v2694 = vpop.f32.mrb[0].mxu0
      %2695 = vmatprep.mubr.f32.mxu0 0.0
      %2696 = vmatmul.mubr.f32.gmra.mrb[0].mxu0 %v2553
      %v2697 = vpop.f32.mrb[0].mxu0
      %v2698 = vadd.f32 %v2118, %v2697
      %v2699 = vpop.f32.mrb[0].mxu0
      %2700 = vmatprep.mubr.f32.mxu0 0.0
      %2701 = vmatmul.mubr.f32.gmra.mrb[0].mxu0 %v2555
      %v2702 = vpop.f32.mrb[0].mxu0
      %v2703 = vadd.f32 %v2118, %v2702
      %v2704 = vpop.f32.mrb[0].mxu0
      %2705 = vmatprep.mubr.f32.mxu0 0.0
      %2706 = vmatmul.mubr.f32.gmra.mrb[0].mxu0 %v2557
      %v2707 = vpop.f32.mrb[0].mxu0
      %v2708 = vadd.f32 %v2118, %v2707
      %v2709 = vpop.f32.mrb[0].mxu0
      %2710 = vmatprep.mubr.f32.mxu0 0.0
      %2711 = vmatmul.mubr.f32.gmra.mrb[0].mxu0 %v2559
      %v2712 = vpop.f32.mrb[0].mxu0
      %v2713 = vadd.f32 %v2118, %v2712
      %v2714 = vpop.f32.mrb[0].mxu0
      %2715 = vmatprep.mubr.f32.mxu0 0.0
      %2716 = vmatmul.mubr.f32.gmra.mrb[0].mxu0 %v2561
      %v2717 = vpop.f32.mrb[0].mxu0
      %v2718 = vadd.f32 %v2118, %v2717
      %v2719 = vpop.f32.mrb[0].mxu0
      %2720 = vmatprep.mubr.f32.mxu0 0.0
      %2721 = vmatmul.mubr.f32.gmra.mrb[0].mxu0 %v2563
      %v2722 = vpop.f32.mrb[0].mxu0
      %v2723 = vadd.f32 %v2118, %v2722
      %v2724 = vpop.f32.mrb[0].mxu0
      %2725 = vmatprep.mubr.f32.mxu0 0.0
      %2726 = vmatmul.mubr.f32.gmra.mrb[0].mxu0 %v2565
      %v2727 = vpop.f32.mrb[0].mxu0
      %v2728 = vadd.f32 %v2118, %v2727
      %v2729 = vpop.f32.mrb[0].mxu0
      %2730 = vmatprep.mubr.f32.mxu0 0.0
      %2731 = vmatmul.mubr.f32.gmra.mrb[0].mxu0 %v2567
      %v2732 = vpop.f32.mrb[0].mxu0
      %v2733 = vadd.f32 %v2118, %v2732
      %v2734 = vpop.f32.mrb[0].mxu0
      %2735 = vmatprep.mubr.f32.mxu0 0.0
      %2736 = vmatmul.mubr.f32.gmra.mrb[0].mxu0 %v2569
      %v2737 = vpop.f32.mrb[0].mxu0
      %v2738 = vadd.f32 %v2118, %v2737
      %v2739 = vpop.f32.mrb[0].mxu0
      %2740 = vmatprep.mubr.f32.mxu0 0.0
      %2741 = vmatmul.mubr.f32.gmra.mrb[0].mxu0 %v2571
      %v2742 = vpop.f32.mrb[0].mxu0
      %v2743 = vadd.f32 %v2118, %v2742
      %v2744 = vpop.f32.mrb[0].mxu0
      %2745 = vmatprep.mubr.f32.mxu0 0.0
      %2746 = vmatmul.mubr.f32.gmra.mrb[0].mxu0 %v2573
      %v2747 = vpop.f32.mrb[0].mxu0
      %v2748 = vadd.f32 %v2118, %v2747
      %v2749 = vpop.f32.mrb[0].mxu0
      %2750 = vmatprep.mubr.f32.mxu0 0.0
      %2751 = vmatmul.mubr.f32.gmra.mrb[0].mxu0 %v2575
      %v2752 = vpop.f32.mrb[0].mxu0
      %v2753 = vadd.f32 %v2118, %v2752
      %v2754 = vpop.f32.mrb[0].mxu0
      %2755 = vmatprep.mubr.f32.mxu0 0.0
      %2756 = vmatmul.mubr.f32.gmra.mrb[0].mxu0 %v2577
      %v2757 = vpop.f32.mrb[0].mxu0
      %v2758 = vadd.f32 %v2118, %v2757
      %v2759 = vpop.f32.mrb[0].mxu0
      %2760 = vmatprep.mubr.f32.mxu0 0.0
      %2761 = vmatmul.mubr.f32.gmra.mrb[0].mxu0 %v2579
      %v2762 = vpop.f32.mrb[0].mxu0
      %v2763 = vadd.f32 %v2118, %v2762
      %v2764 = vpop.f32.mrb[0].mxu0
      %2765 = vmatprep.mubr.f32.mxu0 0.0
      %2766 = vmatmul.mubr.f32.gmra.mrb[0].mxu0 %v2581
      %v2767 = vpop.f32.mrb[0].mxu0
      %v2768 = vadd.f32 %v2118, %v2767
      %v2769 = vpop.f32.mrb[0].mxu0
      %2770 = vmatprep.mubr.f32.mxu0 0.0
      %2771 = vmatmul.mubr.f32.gmra.mrb[0].mxu0 %v2583
      %v2772 = vpop.f32.mrb[0].mxu0
      %v2773 = vadd.f32 %v2118, %v2772
      %v2774 = vpop.f32.mrb[0].mxu0
      %2775 = vmatprep.mubr.f32.mxu0 0.0
      %2776 = vmatmul.mubr.f32.gmra.mrb[0].mxu0 %v2585
      %v2777 = vpop.f32.mrb[0].mxu0
      %v2778 = vadd.f32 %v2118, %v2777
      %v2779 = vpop.f32.mrb[0].mxu0
      %2780 = vdwg.mxu0
      %2781 = vst [vmem:[%s170] sm:$0xff] %v2658
      %2782 = vst [vmem:[%s170 + $0x8] sm:$0xff] %v2663
      %2783 = vst [vmem:[%s170 + $0x10] sm:$0xff] %v2668
      %2784 = vst [vmem:[%s170 + $0x18] sm:$0xff] %v2673
      %2785 = vst [vmem:[%s170 + $0x20] sm:$0xff] %v2678
      %2786 = vst [vmem:[%s170 + $0x28] sm:$0xff] %v2683
      %2787 = vst [vmem:[%s170 + $0x30] sm:$0xff] %v2688
      %2788 = vst [vmem:[%s170 + $0x38] sm:$0xff] %v2693
      %2789 = vst [vmem:[%s170 + $0x40] sm:$0xff] %v2698
      %2790 = vst [vmem:[%s170 + $0x48] sm:$0xff] %v2703
      %2791 = vst [vmem:[%s170 + $0x50] sm:$0xff] %v2708
      %2792 = vst [vmem:[%s170 + $0x58] sm:$0xff] %v2713
      %2793 = vst [vmem:[%s170 + $0x60] sm:$0xff] %v2718
      %2794 = vst [vmem:[%s170 + $0x68] sm:$0xff] %v2723
      %2795 = vst [vmem:[%s170 + $0x70] sm:$0xff] %v2728
      %2796 = vst [vmem:[%s170 + $0x78] sm:$0xff] %v2733
      %2797 = vst [vmem:[%s170 + $0x80] sm:$0xff] %v2738
      %2798 = vst [vmem:[%s170 + $0x88] sm:$0xff] %v2743
      %2799 = vst [vmem:[%s170 + $0x90] sm:$0xff] %v2748
      %2800 = vst [vmem:[%s170 + $0x98] sm:$0xff] %v2753
      %2801 = vst [vmem:[%s170 + $0xa0] sm:$0xff] %v2758
      %2802 = vst [vmem:[%s170 + $0xa8] sm:$0xff] %v2763
      %2803 = vst [vmem:[%s170 + $0xb0] sm:$0xff] %v2768
      %2804 = vst [vmem:[%s170 + $0xb8] sm:$0xff] %v2773
      %2805 = vst [vmem:[%s170 + $0xc0] sm:$0xf] %v2778
      %p2806 = scmp.lt.s32.totalorder %s14, 1
      %s2807 = scalar_select %p2806, %s14, 1
      %s2808 = smul.addr %s2807, 25
      %s2809 = smul.addr %s2808, 8
      %s2810 = scalar_lea.vmem %s3, %s2809
      // Predicated region
      $region33: #{tpu_custom_call.1} parent=31 // pred_check
        %p2811 = pneg %p100
      $region34: #{tpu_custom_call.1} parent=31 // pred_check_branch
        %2813 = sbr.rel (%p2811) target = $region36
      $region35: #{tpu_custom_call.1} parent=31 // pred_region
        _
      $region36: #{tpu_custom_call.1} parent=31 // pred_fallthru
        _
    $region32: #{tpu_custom_call.1} parent=5 // pred_fallthru
      _
    %p2814 = scmp.le.s32.totalorder 2, %s9
    // Predicated region
    $region37: #{tpu_custom_call.1} parent=5 // pred_check
      %p2815 = pneg %p2814
    $region38: #{tpu_custom_call.1} parent=5 // pred_check_branch
      %2817 = sbr.rel (%p2815) target = $region40
    $region39: #{tpu_custom_call.1} parent=5 // pred_region
      %s2818 = ssub.s32 %s9, 2
      // Predicated region
      $region41: #{tpu_custom_call.1} parent=39 // pred_check
        %p2819 = pneg %p106
      $region42: #{tpu_custom_call.1} parent=39 // pred_check_branch
        %2821 = sbr.rel (%p2819) target = $region44
      $region43: #{tpu_custom_call.1} parent=39 // pred_region
        %p2822 = scmp.lt.s32.totalorder %s15, 1
        %s2823 = scalar_select %p2822, %s15, 1
        %s2824 = smul.addr %s2823, 25
        %s2825 = smul.addr %s2824, 8
        %s2826 = scalar_lea.vmem %s3, %s2825
      $region44: #{tpu_custom_call.1} parent=39 // pred_fallthru
        _
    $region40: #{tpu_custom_call.1} parent=5 // pred_fallthru
      _
  $region6: #{tpu_custom_call.1} parent=0 // loop_footer
    %s13 = sadd.s32 1, %s9
  $region7: #{tpu_custom_call.1} parent=0 // loop_footer_branch
    %8 = sbr.rel target = $region3
  $region8: #{tpu_custom_call.1} parent=0 // loop_exit
    _

</llo_original>
